<compile_context>
chip_gen: v5e
topology: v5e:2x2
jax: 0.10.0
libtpu: 0.0.40
codegen_flags: <defaults>
</compile_context>

<pallas_src>
import functools

import jax
import jax.numpy as jnp
from jax.experimental import pallas as pl
from jax.experimental.pallas import tpu as pltpu

LN_EPS = 1e-5
LANE = 128


# ----------------------------- in-kernel math --------------------------------

def _layernorm(x, g, b, d_real):
    """LayerNorm over the last dim ignoring zero pad columns.

    x: [T, DP] f32 with zeros in columns >= d_real.  Stats use sum / sum-of-
    squares so pad columns contribute nothing; g/b are zero in pad columns so
    the affine output's pad columns are exactly zero.
    """
    inv_d = 1.0 / float(d_real)
    mean = jnp.sum(x, axis=-1, keepdims=True) * inv_d
    meansq = jnp.sum(x * x, axis=-1, keepdims=True) * inv_d
    var = meansq - mean * mean
    xn = (x - mean) * jax.lax.rsqrt(var + LN_EPS)
    return xn * g + b


def _resblock(x, g, b, wi, bi, wm, bm, wo, bo, d_in):
    """Torch ResBlock: h = l_in(LN(x)); out = l_out(relu(l_mid(h))) + h."""
    xn = _layernorm(x, g, b, d_in)
    h = jnp.dot(xn.astype(jnp.bfloat16), wi, preferred_element_type=jnp.float32) + bi
    m = jnp.dot(h.astype(jnp.bfloat16), wm, preferred_element_type=jnp.float32) + bm
    m = jnp.maximum(m, 0.0)
    y = jnp.dot(m.astype(jnp.bfloat16), wo, preferred_element_type=jnp.float32) + bo
    return y + h


# ------------------------------- fused kernel --------------------------------

def _fused_kernel(d_h, d_r,
                  x_ref,
                  # proj_in ResBlock
                  pi_g, pi_b, pi_wi, pi_bi, pi_wm, pi_bm, pi_wo, pi_bo,
                  # counterfact-LM stand-in block
                  c_ln1g, c_ln1b, c_wq, c_wk, c_wv, c_wp,
                  c_ln2g, c_ln2b, c_w1, c_b1, c_w2, c_b2,
                  # proj_out ResBlock
                  po_g, po_b, po_wi, po_bi, po_wm, po_bm, po_wo, po_bo,
                  # lm head
                  lm_w,
                  o_ref):
    x = x_ref[...].astype(jnp.float32)                              # [T, HP]
    t = x.shape[0]

    # --- proj_in ResBlock: [T, HP] -> [T, RP] ---
    x = _resblock(x, pi_g[...], pi_b[...], pi_wi[...], pi_bi[...],
                  pi_wm[...], pi_bm[...], pi_wo[...], pi_bo[...], d_h)

    # --- causal-LM stand-in: pre-LN attention + MLP block ---
    h = _layernorm(x, c_ln1g[...], c_ln1b[...], d_r)
    hb = h.astype(jnp.bfloat16)
    q = jnp.dot(hb, c_wq[...], preferred_element_type=jnp.float32)
    k = jnp.dot(hb, c_wk[...], preferred_element_type=jnp.float32)
    v = jnp.dot(hb, c_wv[...], preferred_element_type=jnp.float32)
    # q @ k^T via dot_general (no explicit transpose); f32 scores / mask / softmax.
    s = jax.lax.dot_general(q.astype(jnp.bfloat16), k.astype(jnp.bfloat16),
                            (((1,), (1,)), ((), ())),
                            preferred_element_type=jnp.float32)
    s = s * (1.0 / (float(d_r) ** 0.5))
    row = jax.lax.broadcasted_iota(jnp.int32, (t, t), 0)
    col = jax.lax.broadcasted_iota(jnp.int32, (t, t), 1)
    s = jnp.where(row >= col, s, -1e30)                             # causal (pads at end)
    s = s - jnp.max(s, axis=-1, keepdims=True)
    p = jnp.exp(s)
    p = p * pl.reciprocal(jnp.sum(p, axis=-1, keepdims=True), approx=True)
    a = jnp.dot(p.astype(jnp.bfloat16), v.astype(jnp.bfloat16),
                preferred_element_type=jnp.float32)
    x = x + jnp.dot(a.astype(jnp.bfloat16), c_wp[...],
                    preferred_element_type=jnp.float32)

    h2 = _layernorm(x, c_ln2g[...], c_ln2b[...], d_r)
    m = jnp.dot(h2.astype(jnp.bfloat16), c_w1[...],
                preferred_element_type=jnp.float32) + c_b1[...]
    m = jnp.maximum(m, 0.0)
    x = x + jnp.dot(m.astype(jnp.bfloat16), c_w2[...],
                    preferred_element_type=jnp.float32) + c_b2[...]

    # --- proj_out ResBlock: [T, RP] -> [T, HP] ---
    x = _resblock(x, po_g[...], po_b[...], po_wi[...], po_bi[...],
                  po_wm[...], po_bm[...], po_wo[...], po_bo[...], d_r)

    # --- lm head: [T, HP] @ [HP, VP] -> [T, VP] (lane-dense output) ---
    o_ref[...] = jnp.dot(x.astype(jnp.bfloat16), lm_w[...],
                         preferred_element_type=jnp.float32).astype(o_ref.dtype)


PARAM_KEYS = (
    "pi_g", "pi_b", "pi_wi", "pi_bi", "pi_wm", "pi_bm", "pi_wo", "pi_bo",
    "c_ln1g", "c_ln1b", "c_wq", "c_wk", "c_wv", "c_wp",
    "c_ln2g", "c_ln2b", "c_w1", "c_b1", "c_w2", "c_b2",
    "po_g", "po_b", "po_wi", "po_bi", "po_wm", "po_bm", "po_wo", "po_bo",
    "lm_w",
)


def counterfact_fused(params, x_batch, *, d_h, d_r):
    """x_batch: [N, TP, HP] padded pairs -> [N, TP, VP] logits."""
    n, tp, hp = x_batch.shape
    vp = params["lm_w"].shape[1]
    weights = [params[key] for key in PARAM_KEYS]

    x_spec = pl.BlockSpec((None, tp, hp), lambda i: (i, 0, 0))
    # Constant block index -> weights stay VMEM-resident across the grid.
    w_specs = [pl.BlockSpec(w.shape, lambda i: (0, 0)) for w in weights]
    out_spec = pl.BlockSpec((None, tp, vp), lambda i: (i, 0, 0))

    return pl.pallas_call(
        functools.partial(_fused_kernel, d_h, d_r),
        out_shape=jax.ShapeDtypeStruct((n, tp, vp), jnp.float32),
        grid=(n,),
        in_specs=[x_spec] + w_specs,
        out_specs=out_spec,
        compiler_params=pltpu.CompilerParams(
            dimension_semantics=("parallel",)),
    )(x_batch, *weights)


# --------------------------- parameter setup ---------------------------------

def _round_up(x, m):
    return -(-x // m) * m


def _pad2(a, rows, cols):
    out = jnp.zeros((rows, cols), a.dtype)
    return out.at[: a.shape[0], : a.shape[1]].set(a)


def _linear_w(key, d_in, d_out, dp_in, dp_out, scale=0.05):
    w = jax.random.normal(key, (d_in, d_out), jnp.float32) * scale
    return _pad2(w, dp_in, dp_out).astype(jnp.bfloat16)   # bf16 MXU operand


def _init_resblock(key, prefix, d_in, d_out, dp_in, dp_out):
    k1, k2, k3 = jax.random.split(key, 3)
    return {
        f"{prefix}_g": _pad2(jnp.ones((1, d_in), jnp.float32), 1, dp_in),
        f"{prefix}_b": jnp.zeros((1, dp_in), jnp.float32),
        f"{prefix}_wi": _linear_w(k1, d_in, d_out, dp_in, dp_out),
        f"{prefix}_bi": jnp.zeros((1, dp_out), jnp.float32),
        f"{prefix}_wm": _linear_w(k2, d_out, d_out, dp_out, dp_out),
        f"{prefix}_bm": jnp.zeros((1, dp_out), jnp.float32),
        f"{prefix}_wo": _linear_w(k3, d_out, d_out, dp_out, dp_out),
        f"{prefix}_bo": jnp.zeros((1, dp_out), jnp.float32),
    }


def _init_cf_block(key, d_r, dp_r):
    ks = jax.random.split(key, 6)
    hid = 2 * d_r
    hid_p = _round_up(hid, LANE)
    return {
        "c_ln1g": _pad2(jnp.ones((1, d_r), jnp.float32), 1, dp_r),
        "c_ln1b": jnp.zeros((1, dp_r), jnp.float32),
        "c_wq": _linear_w(ks[0], d_r, d_r, dp_r, dp_r),
        "c_wk": _linear_w(ks[1], d_r, d_r, dp_r, dp_r),
        "c_wv": _linear_w(ks[2], d_r, d_r, dp_r, dp_r),
        "c_wp": _linear_w(ks[3], d_r, d_r, dp_r, dp_r),
        "c_ln2g": _pad2(jnp.ones((1, d_r), jnp.float32), 1, dp_r),
        "c_ln2b": jnp.zeros((1, dp_r), jnp.float32),
        "c_w1": _linear_w(ks[4], d_r, hid, dp_r, hid_p),
        "c_b1": jnp.zeros((1, hid_p), jnp.float32),
        "c_w2": _linear_w(ks[5], hid, d_r, hid_p, dp_r),
        "c_b2": jnp.zeros((1, dp_r), jnp.float32),
    }


def init_counterfact_model(key, llm_hidden, rep_dim, vocab):
    hp = _round_up(llm_hidden, LANE)
    rp = _round_up(rep_dim, LANE)
    vp = _round_up(vocab, LANE)
    k1, k2, k3, k4 = jax.random.split(key, 4)
    params = {}
    params.update(_init_resblock(k1, "pi", llm_hidden, rep_dim, hp, rp))
    params.update(_init_cf_block(k2, rep_dim, rp))
    params.update(_init_resblock(k3, "po", rep_dim, llm_hidden, rp, hp))
    lm_w = jax.random.normal(k4, (llm_hidden, vocab), jnp.float32) * 0.05
    params["lm_w"] = _pad2(lm_w, hp, vp).astype(jnp.bfloat16)
    return params, hp, rp, vp


# ------------------------------ forward -------------------------------------

def forward_with_request_embd(params, edit_embeds, input_embeds, *,
                              llm_hidden, rep_dim, vocab, hp):
    """Mirrors CounterfactModel.forward_with_request_embd.

    edit_embeds / input_embeds: lists of [1, T_e, H] / [1, T_i, H] arrays.
    Returns a list of [1, T_i, vocab] logits.
    """
    assert len(edit_embeds) == len(input_embeds)
    lengths = [ee.shape[1] + ie.shape[1] for ee, ie in zip(edit_embeds, input_embeds)]
    tp = max(8, _round_up(max(lengths), 8))      # common padded T (multiple of 8 sublanes)

    xs = []
    for ee, ie in zip(edit_embeds, input_embeds):
        seq = jnp.concatenate([ee[0], ie[0]], axis=0).astype(jnp.float32)   # [T_pair, H]
        buf = jnp.zeros((tp, hp), jnp.float32)
        xs.append(buf.at[: seq.shape[0], : seq.shape[1]].set(seq))
    x_batch = jnp.stack(xs, axis=0)              # [N, TP, HP]

    logits = counterfact_fused(params, x_batch, d_h=llm_hidden, d_r=rep_dim)  # [N, TP, VP]

    out = []
    for i, (ee, ie) in enumerate(zip(edit_embeds, input_embeds)):
        te, ti = ee.shape[1], ie.shape[1]
        out.append(logits[i, te: te + ti, :vocab][None, :, :])   # drop edit prefix + pads
    return out


# -------------------------------- main ---------------------------------------

if __name__ == "__main__":
    LLM_HIDDEN = 32        # cfg.llm_hidden_size
    REP_DIM = 64           # cfg.counterfact_model_rep_dim
    VOCAB = 128            # map_to_edit_llm_logits output dim

    key = jax.random.PRNGKey(0)
    kp, ke1, ki1, ke2, ki2 = jax.random.split(key, 5)

    params, HP, RP, VP = init_counterfact_model(kp, LLM_HIDDEN, REP_DIM, VOCAB)

    # Two (edit, input) pairs with different sequence lengths, batch=1 each.
    edit_embeds = [
        jax.random.normal(ke1, (1, 8, LLM_HIDDEN), jnp.float32),
        jax.random.normal(ke2, (1, 4, LLM_HIDDEN), jnp.float32),
    ]
    input_embeds = [
        jax.random.normal(ki1, (1, 8, LLM_HIDDEN), jnp.float32),
        jax.random.normal(ki2, (1, 4, LLM_HIDDEN), jnp.float32),
    ]

    out = forward_with_request_embd(params, edit_embeds, input_embeds,
                                    llm_hidden=LLM_HIDDEN, rep_dim=REP_DIM,
                                    vocab=VOCAB, hp=HP)
    out = [jax.block_until_ready(o) for o in out]

    assert out[0].shape == (1, 8, VOCAB), out[0].shape
    assert out[1].shape == (1, 4, VOCAB), out[1].shape
    assert all(bool(jnp.all(jnp.isfinite(o))) for o in out)
    print("KERNEL_OK")
</pallas_src>

<mosaic_0001>
module attributes {stable_mosaic.version = 11 : i64} {
  func.func @_fused_kernel(%arg0: i32, %arg1: memref<1x16x128xf32, #tpu.memory_space<vmem>>, %arg2: memref<1x128xf32, #tpu.memory_space<vmem>>, %arg3: memref<1x128xf32, #tpu.memory_space<vmem>>, %arg4: memref<128x128xbf16, #tpu.memory_space<vmem>>, %arg5: memref<1x128xf32, #tpu.memory_space<vmem>>, %arg6: memref<128x128xbf16, #tpu.memory_space<vmem>>, %arg7: memref<1x128xf32, #tpu.memory_space<vmem>>, %arg8: memref<128x128xbf16, #tpu.memory_space<vmem>>, %arg9: memref<1x128xf32, #tpu.memory_space<vmem>>, %arg10: memref<1x128xf32, #tpu.memory_space<vmem>>, %arg11: memref<1x128xf32, #tpu.memory_space<vmem>>, %arg12: memref<128x128xbf16, #tpu.memory_space<vmem>>, %arg13: memref<128x128xbf16, #tpu.memory_space<vmem>>, %arg14: memref<128x128xbf16, #tpu.memory_space<vmem>>, %arg15: memref<128x128xbf16, #tpu.memory_space<vmem>>, %arg16: memref<1x128xf32, #tpu.memory_space<vmem>>, %arg17: memref<1x128xf32, #tpu.memory_space<vmem>>, %arg18: memref<128x128xbf16, #tpu.memory_space<vmem>>, %arg19: memref<1x128xf32, #tpu.memory_space<vmem>>, %arg20: memref<128x128xbf16, #tpu.memory_space<vmem>>, %arg21: memref<1x128xf32, #tpu.memory_space<vmem>>, %arg22: memref<1x128xf32, #tpu.memory_space<vmem>>, %arg23: memref<1x128xf32, #tpu.memory_space<vmem>>, %arg24: memref<128x128xbf16, #tpu.memory_space<vmem>>, %arg25: memref<1x128xf32, #tpu.memory_space<vmem>>, %arg26: memref<128x128xbf16, #tpu.memory_space<vmem>>, %arg27: memref<1x128xf32, #tpu.memory_space<vmem>>, %arg28: memref<128x128xbf16, #tpu.memory_space<vmem>>, %arg29: memref<1x128xf32, #tpu.memory_space<vmem>>, %arg30: memref<128x128xbf16, #tpu.memory_space<vmem>>, %arg31: memref<1x16x128xf32, #tpu.memory_space<vmem>>) attributes {dimension_semantics = [#tpu.dimension_semantics<parallel>], iteration_bounds = array<i64: 2>, scalar_prefetch = 0 : i64, scratch_operands = 0 : i64, tpu.core_type = #tpu.core_type<tc>, window_params = [{transform_indices = @transform_0, window_bounds = array<i64: 1, 16, 128>}, {pipeline_mode = #tpu.pipeline_mode<synchronous>, transform_indices = @transform_1, window_bounds = array<i64: 1, 128>}, {pipeline_mode = #tpu.pipeline_mode<synchronous>, transform_indices = @transform_2, window_bounds = array<i64: 1, 128>}, {pipeline_mode = #tpu.pipeline_mode<synchronous>, transform_indices = @transform_3, window_bounds = array<i64: 128, 128>}, {pipeline_mode = #tpu.pipeline_mode<synchronous>, transform_indices = @transform_4, window_bounds = array<i64: 1, 128>}, {pipeline_mode = #tpu.pipeline_mode<synchronous>, transform_indices = @transform_5, window_bounds = array<i64: 128, 128>}, {pipeline_mode = #tpu.pipeline_mode<synchronous>, transform_indices = @transform_6, window_bounds = array<i64: 1, 128>}, {pipeline_mode = #tpu.pipeline_mode<synchronous>, transform_indices = @transform_7, window_bounds = array<i64: 128, 128>}, {pipeline_mode = #tpu.pipeline_mode<synchronous>, transform_indices = @transform_8, window_bounds = array<i64: 1, 128>}, {pipeline_mode = #tpu.pipeline_mode<synchronous>, transform_indices = @transform_9, window_bounds = array<i64: 1, 128>}, {pipeline_mode = #tpu.pipeline_mode<synchronous>, transform_indices = @transform_10, window_bounds = array<i64: 1, 128>}, {pipeline_mode = #tpu.pipeline_mode<synchronous>, transform_indices = @transform_11, window_bounds = array<i64: 128, 128>}, {pipeline_mode = #tpu.pipeline_mode<synchronous>, transform_indices = @transform_12, window_bounds = array<i64: 128, 128>}, {pipeline_mode = #tpu.pipeline_mode<synchronous>, transform_indices = @transform_13, window_bounds = array<i64: 128, 128>}, {pipeline_mode = #tpu.pipeline_mode<synchronous>, transform_indices = @transform_14, window_bounds = array<i64: 128, 128>}, {pipeline_mode = #tpu.pipeline_mode<synchronous>, transform_indices = @transform_15, window_bounds = array<i64: 1, 128>}, {pipeline_mode = #tpu.pipeline_mode<synchronous>, transform_indices = @transform_16, window_bounds = array<i64: 1, 128>}, {pipeline_mode = #tpu.pipeline_mode<synchronous>, transform_indices = @transform_17, window_bounds = array<i64: 128, 128>}, {pipeline_mode = #tpu.pipeline_mode<synchronous>, transform_indices = @transform_18, window_bounds = array<i64: 1, 128>}, {pipeline_mode = #tpu.pipeline_mode<synchronous>, transform_indices = @transform_19, window_bounds = array<i64: 128, 128>}, {pipeline_mode = #tpu.pipeline_mode<synchronous>, transform_indices = @transform_20, window_bounds = array<i64: 1, 128>}, {pipeline_mode = #tpu.pipeline_mode<synchronous>, transform_indices = @transform_21, window_bounds = array<i64: 1, 128>}, {pipeline_mode = #tpu.pipeline_mode<synchronous>, transform_indices = @transform_22, window_bounds = array<i64: 1, 128>}, {pipeline_mode = #tpu.pipeline_mode<synchronous>, transform_indices = @transform_23, window_bounds = array<i64: 128, 128>}, {pipeline_mode = #tpu.pipeline_mode<synchronous>, transform_indices = @transform_24, window_bounds = array<i64: 1, 128>}, {pipeline_mode = #tpu.pipeline_mode<synchronous>, transform_indices = @transform_25, window_bounds = array<i64: 128, 128>}, {pipeline_mode = #tpu.pipeline_mode<synchronous>, transform_indices = @transform_26, window_bounds = array<i64: 1, 128>}, {pipeline_mode = #tpu.pipeline_mode<synchronous>, transform_indices = @transform_27, window_bounds = array<i64: 128, 128>}, {pipeline_mode = #tpu.pipeline_mode<synchronous>, transform_indices = @transform_28, window_bounds = array<i64: 1, 128>}, {pipeline_mode = #tpu.pipeline_mode<synchronous>, transform_indices = @transform_29, window_bounds = array<i64: 128, 128>}, {transform_indices = @transform_30, window_bounds = array<i64: 1, 16, 128>}]} {
    %c0 = arith.constant 0 : index
    %c0_0 = arith.constant 0 : index
    %c0_1 = arith.constant 0 : index
    %0 = vector.load %arg1[%c0, %c0_0, %c0_1] : memref<1x16x128xf32, #tpu.memory_space<vmem>>, vector<1x16x128xf32>
    %1 = vector.shape_cast %0 : vector<1x16x128xf32> to vector<16x128xf32>
    %c0_2 = arith.constant 0 : index
    %c0_3 = arith.constant 0 : index
    %2 = vector.load %arg2[%c0_2, %c0_3] : memref<1x128xf32, #tpu.memory_space<vmem>>, vector<1x128xf32>
    %c0_4 = arith.constant 0 : index
    %c0_5 = arith.constant 0 : index
    %3 = vector.load %arg3[%c0_4, %c0_5] : memref<1x128xf32, #tpu.memory_space<vmem>>, vector<1x128xf32>
    %c0_6 = arith.constant 0 : index
    %c0_7 = arith.constant 0 : index
    %4 = vector.load %arg4[%c0_6, %c0_7] : memref<128x128xbf16, #tpu.memory_space<vmem>>, vector<128x128xbf16>
    %c0_8 = arith.constant 0 : index
    %c0_9 = arith.constant 0 : index
    %5 = vector.load %arg5[%c0_8, %c0_9] : memref<1x128xf32, #tpu.memory_space<vmem>>, vector<1x128xf32>
    %c0_10 = arith.constant 0 : index
    %c0_11 = arith.constant 0 : index
    %6 = vector.load %arg6[%c0_10, %c0_11] : memref<128x128xbf16, #tpu.memory_space<vmem>>, vector<128x128xbf16>
    %c0_12 = arith.constant 0 : index
    %c0_13 = arith.constant 0 : index
    %7 = vector.load %arg7[%c0_12, %c0_13] : memref<1x128xf32, #tpu.memory_space<vmem>>, vector<1x128xf32>
    %c0_14 = arith.constant 0 : index
    %c0_15 = arith.constant 0 : index
    %8 = vector.load %arg8[%c0_14, %c0_15] : memref<128x128xbf16, #tpu.memory_space<vmem>>, vector<128x128xbf16>
    %c0_16 = arith.constant 0 : index
    %c0_17 = arith.constant 0 : index
    %9 = vector.load %arg9[%c0_16, %c0_17] : memref<1x128xf32, #tpu.memory_space<vmem>>, vector<1x128xf32>
    %cst = arith.constant dense<0.000000e+00> : vector<16xf32>
    %10 = vector.multi_reduction <add>, %1, %cst [1] : vector<16x128xf32> to vector<16xf32>
    %11 = vector.shape_cast %10 : vector<16xf32> to vector<16x1xf32>
    %cst_18 = arith.constant 3.125000e-02 : f32
    %12 = vector.broadcast %cst_18 : f32 to vector<16x1xf32>
    %13 = arith.mulf %11, %12 : vector<16x1xf32>
    %14 = arith.mulf %1, %1 : vector<16x128xf32>
    %cst_19 = arith.constant dense<0.000000e+00> : vector<16xf32>
    %15 = vector.multi_reduction <add>, %14, %cst_19 [1] : vector<16x128xf32> to vector<16xf32>
    %16 = vector.shape_cast %15 : vector<16xf32> to vector<16x1xf32>
    %cst_20 = arith.constant 3.125000e-02 : f32
    %17 = vector.broadcast %cst_20 : f32 to vector<16x1xf32>
    %18 = arith.mulf %16, %17 : vector<16x1xf32>
    %19 = arith.mulf %13, %13 : vector<16x1xf32>
    %20 = arith.subf %18, %19 : vector<16x1xf32>
    %21 = vector.broadcast %13 : vector<16x1xf32> to vector<16x128xf32>
    %22 = arith.subf %1, %21 : vector<16x128xf32>
    %cst_21 = arith.constant 9.99999974E-6 : f32
    %23 = vector.broadcast %cst_21 : f32 to vector<16x1xf32>
    %24 = arith.addf %20, %23 : vector<16x1xf32>
    %25 = math.rsqrt %24 : vector<16x1xf32>
    %26 = vector.broadcast %25 : vector<16x1xf32> to vector<16x128xf32>
    %27 = arith.mulf %22, %26 : vector<16x128xf32>
    %28 = vector.broadcast %2 : vector<1x128xf32> to vector<16x128xf32>
    %29 = arith.mulf %27, %28 : vector<16x128xf32>
    %30 = vector.broadcast %3 : vector<1x128xf32> to vector<16x128xf32>
    %31 = arith.addf %29, %30 : vector<16x128xf32>
    %32 = arith.truncf %31 : vector<16x128xf32> to vector<16x128xbf16>
    %cst_22 = arith.constant dense<0.000000e+00> : vector<16x128xf32>
    %33 = tpu.matmul %32, %4, %cst_22 {dimension_numbers = #tpu.dot_dimension_numbers<[1], [0], [0], [1], [0, 0, 1, 1], [], []>} : vector<16x128xbf16>, vector<128x128xbf16>, vector<16x128xf32> -> vector<16x128xf32>
    %34 = vector.broadcast %5 : vector<1x128xf32> to vector<16x128xf32>
    %35 = arith.addf %33, %34 : vector<16x128xf32>
    %36 = arith.truncf %35 : vector<16x128xf32> to vector<16x128xbf16>
    %cst_23 = arith.constant dense<0.000000e+00> : vector<16x128xf32>
    %37 = tpu.matmul %36, %6, %cst_23 {dimension_numbers = #tpu.dot_dimension_numbers<[1], [0], [0], [1], [0, 0, 1, 1], [], []>} : vector<16x128xbf16>, vector<128x128xbf16>, vector<16x128xf32> -> vector<16x128xf32>
    %38 = vector.broadcast %7 : vector<1x128xf32> to vector<16x128xf32>
    %39 = arith.addf %37, %38 : vector<16x128xf32>
    %cst_24 = arith.constant 0.000000e+00 : f32
    %40 = vector.broadcast %cst_24 : f32 to vector<16x128xf32>
    %41 = arith.maximumf %39, %40 : vector<16x128xf32>
    %42 = arith.truncf %41 : vector<16x128xf32> to vector<16x128xbf16>
    %cst_25 = arith.constant dense<0.000000e+00> : vector<16x128xf32>
    %43 = tpu.matmul %42, %8, %cst_25 {dimension_numbers = #tpu.dot_dimension_numbers<[1], [0], [0], [1], [0, 0, 1, 1], [], []>} : vector<16x128xbf16>, vector<128x128xbf16>, vector<16x128xf32> -> vector<16x128xf32>
    %44 = vector.broadcast %9 : vector<1x128xf32> to vector<16x128xf32>
    %45 = arith.addf %43, %44 : vector<16x128xf32>
    %46 = arith.addf %45, %35 : vector<16x128xf32>
    %c0_26 = arith.constant 0 : index
    %c0_27 = arith.constant 0 : index
    %47 = vector.load %arg10[%c0_26, %c0_27] : memref<1x128xf32, #tpu.memory_space<vmem>>, vector<1x128xf32>
    %c0_28 = arith.constant 0 : index
    %c0_29 = arith.constant 0 : index
    %48 = vector.load %arg11[%c0_28, %c0_29] : memref<1x128xf32, #tpu.memory_space<vmem>>, vector<1x128xf32>
    %cst_30 = arith.constant dense<0.000000e+00> : vector<16xf32>
    %49 = vector.multi_reduction <add>, %46, %cst_30 [1] : vector<16x128xf32> to vector<16xf32>
    %50 = vector.shape_cast %49 : vector<16xf32> to vector<16x1xf32>
    %cst_31 = arith.constant 1.562500e-02 : f32
    %51 = vector.broadcast %cst_31 : f32 to vector<16x1xf32>
    %52 = arith.mulf %50, %51 : vector<16x1xf32>
    %53 = arith.mulf %46, %46 : vector<16x128xf32>
    %cst_32 = arith.constant dense<0.000000e+00> : vector<16xf32>
    %54 = vector.multi_reduction <add>, %53, %cst_32 [1] : vector<16x128xf32> to vector<16xf32>
    %55 = vector.shape_cast %54 : vector<16xf32> to vector<16x1xf32>
    %cst_33 = arith.constant 1.562500e-02 : f32
    %56 = vector.broadcast %cst_33 : f32 to vector<16x1xf32>
    %57 = arith.mulf %55, %56 : vector<16x1xf32>
    %58 = arith.mulf %52, %52 : vector<16x1xf32>
    %59 = arith.subf %57, %58 : vector<16x1xf32>
    %60 = vector.broadcast %52 : vector<16x1xf32> to vector<16x128xf32>
    %61 = arith.subf %46, %60 : vector<16x128xf32>
    %cst_34 = arith.constant 9.99999974E-6 : f32
    %62 = vector.broadcast %cst_34 : f32 to vector<16x1xf32>
    %63 = arith.addf %59, %62 : vector<16x1xf32>
    %64 = math.rsqrt %63 : vector<16x1xf32>
    %65 = vector.broadcast %64 : vector<16x1xf32> to vector<16x128xf32>
    %66 = arith.mulf %61, %65 : vector<16x128xf32>
    %67 = vector.broadcast %47 : vector<1x128xf32> to vector<16x128xf32>
    %68 = arith.mulf %66, %67 : vector<16x128xf32>
    %69 = vector.broadcast %48 : vector<1x128xf32> to vector<16x128xf32>
    %70 = arith.addf %68, %69 : vector<16x128xf32>
    %71 = arith.truncf %70 : vector<16x128xf32> to vector<16x128xbf16>
    %c0_35 = arith.constant 0 : index
    %c0_36 = arith.constant 0 : index
    %72 = vector.load %arg12[%c0_35, %c0_36] : memref<128x128xbf16, #tpu.memory_space<vmem>>, vector<128x128xbf16>
    %cst_37 = arith.constant dense<0.000000e+00> : vector<16x128xf32>
    %73 = tpu.matmul %71, %72, %cst_37 {dimension_numbers = #tpu.dot_dimension_numbers<[1], [0], [0], [1], [0, 0, 1, 1], [], []>} : vector<16x128xbf16>, vector<128x128xbf16>, vector<16x128xf32> -> vector<16x128xf32>
    %c0_38 = arith.constant 0 : index
    %c0_39 = arith.constant 0 : index
    %74 = vector.load %arg13[%c0_38, %c0_39] : memref<128x128xbf16, #tpu.memory_space<vmem>>, vector<128x128xbf16>
    %cst_40 = arith.constant dense<0.000000e+00> : vector<16x128xf32>
    %75 = tpu.matmul %71, %74, %cst_40 {dimension_numbers = #tpu.dot_dimension_numbers<[1], [0], [0], [1], [0, 0, 1, 1], [], []>} : vector<16x128xbf16>, vector<128x128xbf16>, vector<16x128xf32> -> vector<16x128xf32>
    %c0_41 = arith.constant 0 : index
    %c0_42 = arith.constant 0 : index
    %76 = vector.load %arg14[%c0_41, %c0_42] : memref<128x128xbf16, #tpu.memory_space<vmem>>, vector<128x128xbf16>
    %cst_43 = arith.constant dense<0.000000e+00> : vector<16x128xf32>
    %77 = tpu.matmul %71, %76, %cst_43 {dimension_numbers = #tpu.dot_dimension_numbers<[1], [0], [0], [1], [0, 0, 1, 1], [], []>} : vector<16x128xbf16>, vector<128x128xbf16>, vector<16x128xf32> -> vector<16x128xf32>
    %78 = arith.truncf %73 : vector<16x128xf32> to vector<16x128xbf16>
    %79 = arith.truncf %75 : vector<16x128xf32> to vector<16x128xbf16>
    %cst_44 = arith.constant dense<0.000000e+00> : vector<16x16xf32>
    %80 = tpu.matmul %78, %79, %cst_44 {dimension_numbers = #tpu.dot_dimension_numbers<[1], [1], [0], [0], [0, 0, 1, 0], [], []>} : vector<16x128xbf16>, vector<16x128xbf16>, vector<16x16xf32> -> vector<16x16xf32>
    %cst_45 = arith.constant 1.250000e-01 : f32
    %81 = vector.broadcast %cst_45 : f32 to vector<16x16xf32>
    %82 = arith.mulf %80, %81 : vector<16x16xf32>
    %83 = tpu.iota {dimensions = array<i32: 0>} : vector<16x16xi32>
    %84 = tpu.iota {dimensions = array<i32: 1>} : vector<16x16xi32>
    %85 = arith.cmpi sge, %83, %84 : vector<16x16xi32>
    %cst_46 = arith.constant -1.000000e+30 : f32
    %86 = vector.broadcast %cst_46 : f32 to vector<16x16xf32>
    %87 = arith.select %85, %82, %86 : vector<16x16xi1>, vector<16x16xf32>
    %cst_47 = arith.constant dense<0xFF800000> : vector<16xf32>
    %88 = vector.multi_reduction <maximumf>, %87, %cst_47 [1] : vector<16x16xf32> to vector<16xf32>
    %89 = vector.shape_cast %88 : vector<16xf32> to vector<16x1xf32>
    %90 = vector.broadcast %89 : vector<16x1xf32> to vector<16x16xf32>
    %91 = arith.subf %87, %90 : vector<16x16xf32>
    %92 = math.exp %91 : vector<16x16xf32>
    %cst_48 = arith.constant dense<0.000000e+00> : vector<16xf32>
    %93 = vector.multi_reduction <add>, %92, %cst_48 [1] : vector<16x16xf32> to vector<16xf32>
    %94 = vector.shape_cast %93 : vector<16xf32> to vector<16x1xf32>
    %95 = tpu.reciprocal %94 {approx = true} : vector<16x1xf32> -> vector<16x1xf32>
    %96 = vector.broadcast %95 : vector<16x1xf32> to vector<16x16xf32>
    %97 = arith.mulf %92, %96 : vector<16x16xf32>
    %98 = arith.truncf %97 : vector<16x16xf32> to vector<16x16xbf16>
    %99 = arith.truncf %77 : vector<16x128xf32> to vector<16x128xbf16>
    %cst_49 = arith.constant dense<0.000000e+00> : vector<16x128xf32>
    %100 = tpu.matmul %98, %99, %cst_49 {dimension_numbers = #tpu.dot_dimension_numbers<[1], [0], [0], [1], [0, 0, 1, 1], [], []>} : vector<16x16xbf16>, vector<16x128xbf16>, vector<16x128xf32> -> vector<16x128xf32>
    %101 = arith.truncf %100 : vector<16x128xf32> to vector<16x128xbf16>
    %c0_50 = arith.constant 0 : index
    %c0_51 = arith.constant 0 : index
    %102 = vector.load %arg15[%c0_50, %c0_51] : memref<128x128xbf16, #tpu.memory_space<vmem>>, vector<128x128xbf16>
    %cst_52 = arith.constant dense<0.000000e+00> : vector<16x128xf32>
    %103 = tpu.matmul %101, %102, %cst_52 {dimension_numbers = #tpu.dot_dimension_numbers<[1], [0], [0], [1], [0, 0, 1, 1], [], []>} : vector<16x128xbf16>, vector<128x128xbf16>, vector<16x128xf32> -> vector<16x128xf32>
    %104 = arith.addf %46, %103 : vector<16x128xf32>
    %c0_53 = arith.constant 0 : index
    %c0_54 = arith.constant 0 : index
    %105 = vector.load %arg16[%c0_53, %c0_54] : memref<1x128xf32, #tpu.memory_space<vmem>>, vector<1x128xf32>
    %c0_55 = arith.constant 0 : index
    %c0_56 = arith.constant 0 : index
    %106 = vector.load %arg17[%c0_55, %c0_56] : memref<1x128xf32, #tpu.memory_space<vmem>>, vector<1x128xf32>
    %cst_57 = arith.constant dense<0.000000e+00> : vector<16xf32>
    %107 = vector.multi_reduction <add>, %104, %cst_57 [1] : vector<16x128xf32> to vector<16xf32>
    %108 = vector.shape_cast %107 : vector<16xf32> to vector<16x1xf32>
    %cst_58 = arith.constant 1.562500e-02 : f32
    %109 = vector.broadcast %cst_58 : f32 to vector<16x1xf32>
    %110 = arith.mulf %108, %109 : vector<16x1xf32>
    %111 = arith.mulf %104, %104 : vector<16x128xf32>
    %cst_59 = arith.constant dense<0.000000e+00> : vector<16xf32>
    %112 = vector.multi_reduction <add>, %111, %cst_59 [1] : vector<16x128xf32> to vector<16xf32>
    %113 = vector.shape_cast %112 : vector<16xf32> to vector<16x1xf32>
    %cst_60 = arith.constant 1.562500e-02 : f32
    %114 = vector.broadcast %cst_60 : f32 to vector<16x1xf32>
    %115 = arith.mulf %113, %114 : vector<16x1xf32>
    %116 = arith.mulf %110, %110 : vector<16x1xf32>
    %117 = arith.subf %115, %116 : vector<16x1xf32>
    %118 = vector.broadcast %110 : vector<16x1xf32> to vector<16x128xf32>
    %119 = arith.subf %104, %118 : vector<16x128xf32>
    %cst_61 = arith.constant 9.99999974E-6 : f32
    %120 = vector.broadcast %cst_61 : f32 to vector<16x1xf32>
    %121 = arith.addf %117, %120 : vector<16x1xf32>
    %122 = math.rsqrt %121 : vector<16x1xf32>
    %123 = vector.broadcast %122 : vector<16x1xf32> to vector<16x128xf32>
    %124 = arith.mulf %119, %123 : vector<16x128xf32>
    %125 = vector.broadcast %105 : vector<1x128xf32> to vector<16x128xf32>
    %126 = arith.mulf %124, %125 : vector<16x128xf32>
    %127 = vector.broadcast %106 : vector<1x128xf32> to vector<16x128xf32>
    %128 = arith.addf %126, %127 : vector<16x128xf32>
    %129 = arith.truncf %128 : vector<16x128xf32> to vector<16x128xbf16>
    %c0_62 = arith.constant 0 : index
    %c0_63 = arith.constant 0 : index
    %130 = vector.load %arg18[%c0_62, %c0_63] : memref<128x128xbf16, #tpu.memory_space<vmem>>, vector<128x128xbf16>
    %cst_64 = arith.constant dense<0.000000e+00> : vector<16x128xf32>
    %131 = tpu.matmul %129, %130, %cst_64 {dimension_numbers = #tpu.dot_dimension_numbers<[1], [0], [0], [1], [0, 0, 1, 1], [], []>} : vector<16x128xbf16>, vector<128x128xbf16>, vector<16x128xf32> -> vector<16x128xf32>
    %c0_65 = arith.constant 0 : index
    %c0_66 = arith.constant 0 : index
    %132 = vector.load %arg19[%c0_65, %c0_66] : memref<1x128xf32, #tpu.memory_space<vmem>>, vector<1x128xf32>
    %133 = vector.broadcast %132 : vector<1x128xf32> to vector<16x128xf32>
    %134 = arith.addf %131, %133 : vector<16x128xf32>
    %cst_67 = arith.constant 0.000000e+00 : f32
    %135 = vector.broadcast %cst_67 : f32 to vector<16x128xf32>
    %136 = arith.maximumf %134, %135 : vector<16x128xf32>
    %137 = arith.truncf %136 : vector<16x128xf32> to vector<16x128xbf16>
    %c0_68 = arith.constant 0 : index
    %c0_69 = arith.constant 0 : index
    %138 = vector.load %arg20[%c0_68, %c0_69] : memref<128x128xbf16, #tpu.memory_space<vmem>>, vector<128x128xbf16>
    %cst_70 = arith.constant dense<0.000000e+00> : vector<16x128xf32>
    %139 = tpu.matmul %137, %138, %cst_70 {dimension_numbers = #tpu.dot_dimension_numbers<[1], [0], [0], [1], [0, 0, 1, 1], [], []>} : vector<16x128xbf16>, vector<128x128xbf16>, vector<16x128xf32> -> vector<16x128xf32>
    %140 = arith.addf %104, %139 : vector<16x128xf32>
    %c0_71 = arith.constant 0 : index
    %c0_72 = arith.constant 0 : index
    %141 = vector.load %arg21[%c0_71, %c0_72] : memref<1x128xf32, #tpu.memory_space<vmem>>, vector<1x128xf32>
    %142 = vector.broadcast %141 : vector<1x128xf32> to vector<16x128xf32>
    %143 = arith.addf %140, %142 : vector<16x128xf32>
    %c0_73 = arith.constant 0 : index
    %c0_74 = arith.constant 0 : index
    %144 = vector.load %arg22[%c0_73, %c0_74] : memref<1x128xf32, #tpu.memory_space<vmem>>, vector<1x128xf32>
    %c0_75 = arith.constant 0 : index
    %c0_76 = arith.constant 0 : index
    %145 = vector.load %arg23[%c0_75, %c0_76] : memref<1x128xf32, #tpu.memory_space<vmem>>, vector<1x128xf32>
    %c0_77 = arith.constant 0 : index
    %c0_78 = arith.constant 0 : index
    %146 = vector.load %arg24[%c0_77, %c0_78] : memref<128x128xbf16, #tpu.memory_space<vmem>>, vector<128x128xbf16>
    %c0_79 = arith.constant 0 : index
    %c0_80 = arith.constant 0 : index
    %147 = vector.load %arg25[%c0_79, %c0_80] : memref<1x128xf32, #tpu.memory_space<vmem>>, vector<1x128xf32>
    %c0_81 = arith.constant 0 : index
    %c0_82 = arith.constant 0 : index
    %148 = vector.load %arg26[%c0_81, %c0_82] : memref<128x128xbf16, #tpu.memory_space<vmem>>, vector<128x128xbf16>
    %c0_83 = arith.constant 0 : index
    %c0_84 = arith.constant 0 : index
    %149 = vector.load %arg27[%c0_83, %c0_84] : memref<1x128xf32, #tpu.memory_space<vmem>>, vector<1x128xf32>
    %c0_85 = arith.constant 0 : index
    %c0_86 = arith.constant 0 : index
    %150 = vector.load %arg28[%c0_85, %c0_86] : memref<128x128xbf16, #tpu.memory_space<vmem>>, vector<128x128xbf16>
    %c0_87 = arith.constant 0 : index
    %c0_88 = arith.constant 0 : index
    %151 = vector.load %arg29[%c0_87, %c0_88] : memref<1x128xf32, #tpu.memory_space<vmem>>, vector<1x128xf32>
    %cst_89 = arith.constant dense<0.000000e+00> : vector<16xf32>
    %152 = vector.multi_reduction <add>, %143, %cst_89 [1] : vector<16x128xf32> to vector<16xf32>
    %153 = vector.shape_cast %152 : vector<16xf32> to vector<16x1xf32>
    %cst_90 = arith.constant 1.562500e-02 : f32
    %154 = vector.broadcast %cst_90 : f32 to vector<16x1xf32>
    %155 = arith.mulf %153, %154 : vector<16x1xf32>
    %156 = arith.mulf %143, %143 : vector<16x128xf32>
    %cst_91 = arith.constant dense<0.000000e+00> : vector<16xf32>
    %157 = vector.multi_reduction <add>, %156, %cst_91 [1] : vector<16x128xf32> to vector<16xf32>
    %158 = vector.shape_cast %157 : vector<16xf32> to vector<16x1xf32>
    %cst_92 = arith.constant 1.562500e-02 : f32
    %159 = vector.broadcast %cst_92 : f32 to vector<16x1xf32>
    %160 = arith.mulf %158, %159 : vector<16x1xf32>
    %161 = arith.mulf %155, %155 : vector<16x1xf32>
    %162 = arith.subf %160, %161 : vector<16x1xf32>
    %163 = vector.broadcast %155 : vector<16x1xf32> to vector<16x128xf32>
    %164 = arith.subf %143, %163 : vector<16x128xf32>
    %cst_93 = arith.constant 9.99999974E-6 : f32
    %165 = vector.broadcast %cst_93 : f32 to vector<16x1xf32>
    %166 = arith.addf %162, %165 : vector<16x1xf32>
    %167 = math.rsqrt %166 : vector<16x1xf32>
    %168 = vector.broadcast %167 : vector<16x1xf32> to vector<16x128xf32>
    %169 = arith.mulf %164, %168 : vector<16x128xf32>
    %170 = vector.broadcast %144 : vector<1x128xf32> to vector<16x128xf32>
    %171 = arith.mulf %169, %170 : vector<16x128xf32>
    %172 = vector.broadcast %145 : vector<1x128xf32> to vector<16x128xf32>
    %173 = arith.addf %171, %172 : vector<16x128xf32>
    %174 = arith.truncf %173 : vector<16x128xf32> to vector<16x128xbf16>
    %cst_94 = arith.constant dense<0.000000e+00> : vector<16x128xf32>
    %175 = tpu.matmul %174, %146, %cst_94 {dimension_numbers = #tpu.dot_dimension_numbers<[1], [0], [0], [1], [0, 0, 1, 1], [], []>} : vector<16x128xbf16>, vector<128x128xbf16>, vector<16x128xf32> -> vector<16x128xf32>
    %176 = vector.broadcast %147 : vector<1x128xf32> to vector<16x128xf32>
    %177 = arith.addf %175, %176 : vector<16x128xf32>
    %178 = arith.truncf %177 : vector<16x128xf32> to vector<16x128xbf16>
    %cst_95 = arith.constant dense<0.000000e+00> : vector<16x128xf32>
    %179 = tpu.matmul %178, %148, %cst_95 {dimension_numbers = #tpu.dot_dimension_numbers<[1], [0], [0], [1], [0, 0, 1, 1], [], []>} : vector<16x128xbf16>, vector<128x128xbf16>, vector<16x128xf32> -> vector<16x128xf32>
    %180 = vector.broadcast %149 : vector<1x128xf32> to vector<16x128xf32>
    %181 = arith.addf %179, %180 : vector<16x128xf32>
    %cst_96 = arith.constant 0.000000e+00 : f32
    %182 = vector.broadcast %cst_96 : f32 to vector<16x128xf32>
    %183 = arith.maximumf %181, %182 : vector<16x128xf32>
    %184 = arith.truncf %183 : vector<16x128xf32> to vector<16x128xbf16>
    %cst_97 = arith.constant dense<0.000000e+00> : vector<16x128xf32>
    %185 = tpu.matmul %184, %150, %cst_97 {dimension_numbers = #tpu.dot_dimension_numbers<[1], [0], [0], [1], [0, 0, 1, 1], [], []>} : vector<16x128xbf16>, vector<128x128xbf16>, vector<16x128xf32> -> vector<16x128xf32>
    %186 = vector.broadcast %151 : vector<1x128xf32> to vector<16x128xf32>
    %187 = arith.addf %185, %186 : vector<16x128xf32>
    %188 = arith.addf %187, %177 : vector<16x128xf32>
    %189 = arith.truncf %188 : vector<16x128xf32> to vector<16x128xbf16>
    %c0_98 = arith.constant 0 : index
    %c0_99 = arith.constant 0 : index
    %190 = vector.load %arg30[%c0_98, %c0_99] : memref<128x128xbf16, #tpu.memory_space<vmem>>, vector<128x128xbf16>
    %cst_100 = arith.constant dense<0.000000e+00> : vector<16x128xf32>
    %191 = tpu.matmul %189, %190, %cst_100 {dimension_numbers = #tpu.dot_dimension_numbers<[1], [0], [0], [1], [0, 0, 1, 1], [], []>} : vector<16x128xbf16>, vector<128x128xbf16>, vector<16x128xf32> -> vector<16x128xf32>
    %c0_101 = arith.constant 0 : index
    %c0_102 = arith.constant 0 : index
    %c0_103 = arith.constant 0 : index
    %192 = vector.load %arg31[%c0_101, %c0_102, %c0_103] : memref<1x16x128xf32, #tpu.memory_space<vmem>>, vector<1x16x128xf32>
    %193 = vector.shape_cast %192 : vector<1x16x128xf32> to vector<16x128xf32>
    %194 = vector.shape_cast %191 : vector<16x128xf32> to vector<1x16x128xf32>
    tpu.vector_store %arg31[%c0_101, %c0_102, %c0_103], %194 {strides = array<i32>} : memref<1x16x128xf32, #tpu.memory_space<vmem>>, vector<1x16x128xf32>,
    return
  }
  func.func @transform_0(%arg0: i32) -> (i32, i32, i32) {
    %c0_i32 = arith.constant 0 : i32
    %c0_i32_0 = arith.constant 0 : i32
    %c0_i32_1 = arith.constant 0 : i32
    return %arg0, %c0_i32, %c0_i32_0 : i32, i32, i32
  }
  func.func @transform_1(%arg0: i32) -> (i32, i32) {
    %c0_i32 = arith.constant 0 : i32
    %c0_i32_0 = arith.constant 0 : i32
    %c0_i32_1 = arith.constant 0 : i32
    return %c0_i32, %c0_i32_0 : i32, i32
  }
  func.func @transform_2(%arg0: i32) -> (i32, i32) {
    %c0_i32 = arith.constant 0 : i32
    %c0_i32_0 = arith.constant 0 : i32
    %c0_i32_1 = arith.constant 0 : i32
    return %c0_i32, %c0_i32_0 : i32, i32
  }
  func.func @transform_3(%arg0: i32) -> (i32, i32) {
    %c0_i32 = arith.constant 0 : i32
    %c0_i32_0 = arith.constant 0 : i32
    %c0_i32_1 = arith.constant 0 : i32
    return %c0_i32, %c0_i32_0 : i32, i32
  }
  func.func @transform_4(%arg0: i32) -> (i32, i32) {
    %c0_i32 = arith.constant 0 : i32
    %c0_i32_0 = arith.constant 0 : i32
    %c0_i32_1 = arith.constant 0 : i32
    return %c0_i32, %c0_i32_0 : i32, i32
  }
  func.func @transform_5(%arg0: i32) -> (i32, i32) {
    %c0_i32 = arith.constant 0 : i32
    %c0_i32_0 = arith.constant 0 : i32
    %c0_i32_1 = arith.constant 0 : i32
    return %c0_i32, %c0_i32_0 : i32, i32
  }
  func.func @transform_6(%arg0: i32) -> (i32, i32) {
    %c0_i32 = arith.constant 0 : i32
    %c0_i32_0 = arith.constant 0 : i32
    %c0_i32_1 = arith.constant 0 : i32
    return %c0_i32, %c0_i32_0 : i32, i32
  }
  func.func @transform_7(%arg0: i32) -> (i32, i32) {
    %c0_i32 = arith.constant 0 : i32
    %c0_i32_0 = arith.constant 0 : i32
    %c0_i32_1 = arith.constant 0 : i32
    return %c0_i32, %c0_i32_0 : i32, i32
  }
  func.func @transform_8(%arg0: i32) -> (i32, i32) {
    %c0_i32 = arith.constant 0 : i32
    %c0_i32_0 = arith.constant 0 : i32
    %c0_i32_1 = arith.constant 0 : i32
    return %c0_i32, %c0_i32_0 : i32, i32
  }
  func.func @transform_9(%arg0: i32) -> (i32, i32) {
    %c0_i32 = arith.constant 0 : i32
    %c0_i32_0 = arith.constant 0 : i32
    %c0_i32_1 = arith.constant 0 : i32
    return %c0_i32, %c0_i32_0 : i32, i32
  }
  func.func @transform_10(%arg0: i32) -> (i32, i32) {
    %c0_i32 = arith.constant 0 : i32
    %c0_i32_0 = arith.constant 0 : i32
    %c0_i32_1 = arith.constant 0 : i32
    return %c0_i32, %c0_i32_0 : i32, i32
  }
  func.func @transform_11(%arg0: i32) -> (i32, i32) {
    %c0_i32 = arith.constant 0 : i32
    %c0_i32_0 = arith.constant 0 : i32
    %c0_i32_1 = arith.constant 0 : i32
    return %c0_i32, %c0_i32_0 : i32, i32
  }
  func.func @transform_12(%arg0: i32) -> (i32, i32) {
    %c0_i32 = arith.constant 0 : i32
    %c0_i32_0 = arith.constant 0 : i32
    %c0_i32_1 = arith.constant 0 : i32
    return %c0_i32, %c0_i32_0 : i32, i32
  }
  func.func @transform_13(%arg0: i32) -> (i32, i32) {
    %c0_i32 = arith.constant 0 : i32
    %c0_i32_0 = arith.constant 0 : i32
    %c0_i32_1 = arith.constant 0 : i32
    return %c0_i32, %c0_i32_0 : i32, i32
  }
  func.func @transform_14(%arg0: i32) -> (i32, i32) {
    %c0_i32 = arith.constant 0 : i32
    %c0_i32_0 = arith.constant 0 : i32
    %c0_i32_1 = arith.constant 0 : i32
    return %c0_i32, %c0_i32_0 : i32, i32
  }
  func.func @transform_15(%arg0: i32) -> (i32, i32) {
    %c0_i32 = arith.constant 0 : i32
    %c0_i32_0 = arith.constant 0 : i32
    %c0_i32_1 = arith.constant 0 : i32
    return %c0_i32, %c0_i32_0 : i32, i32
  }
  func.func @transform_16(%arg0: i32) -> (i32, i32) {
    %c0_i32 = arith.constant 0 : i32
    %c0_i32_0 = arith.constant 0 : i32
    %c0_i32_1 = arith.constant 0 : i32
    return %c0_i32, %c0_i32_0 : i32, i32
  }
  func.func @transform_17(%arg0: i32) -> (i32, i32) {
    %c0_i32 = arith.constant 0 : i32
    %c0_i32_0 = arith.constant 0 : i32
    %c0_i32_1 = arith.constant 0 : i32
    return %c0_i32, %c0_i32_0 : i32, i32
  }
  func.func @transform_18(%arg0: i32) -> (i32, i32) {
    %c0_i32 = arith.constant 0 : i32
    %c0_i32_0 = arith.constant 0 : i32
    %c0_i32_1 = arith.constant 0 : i32
    return %c0_i32, %c0_i32_0 : i32, i32
  }
  func.func @transform_19(%arg0: i32) -> (i32, i32) {
    %c0_i32 = arith.constant 0 : i32
    %c0_i32_0 = arith.constant 0 : i32
    %c0_i32_1 = arith.constant 0 : i32
    return %c0_i32, %c0_i32_0 : i32, i32
  }
  func.func @transform_20(%arg0: i32) -> (i32, i32) {
    %c0_i32 = arith.constant 0 : i32
    %c0_i32_0 = arith.constant 0 : i32
    %c0_i32_1 = arith.constant 0 : i32
    return %c0_i32, %c0_i32_0 : i32, i32
  }
  func.func @transform_21(%arg0: i32) -> (i32, i32) {
    %c0_i32 = arith.constant 0 : i32
    %c0_i32_0 = arith.constant 0 : i32
    %c0_i32_1 = arith.constant 0 : i32
    return %c0_i32, %c0_i32_0 : i32, i32
  }
  func.func @transform_22(%arg0: i32) -> (i32, i32) {
    %c0_i32 = arith.constant 0 : i32
    %c0_i32_0 = arith.constant 0 : i32
    %c0_i32_1 = arith.constant 0 : i32
    return %c0_i32, %c0_i32_0 : i32, i32
  }
  func.func @transform_23(%arg0: i32) -> (i32, i32) {
    %c0_i32 = arith.constant 0 : i32
    %c0_i32_0 = arith.constant 0 : i32
    %c0_i32_1 = arith.constant 0 : i32
    return %c0_i32, %c0_i32_0 : i32, i32
  }
  func.func @transform_24(%arg0: i32) -> (i32, i32) {
    %c0_i32 = arith.constant 0 : i32
    %c0_i32_0 = arith.constant 0 : i32
    %c0_i32_1 = arith.constant 0 : i32
    return %c0_i32, %c0_i32_0 : i32, i32
  }
  func.func @transform_25(%arg0: i32) -> (i32, i32) {
    %c0_i32 = arith.constant 0 : i32
    %c0_i32_0 = arith.constant 0 : i32
    %c0_i32_1 = arith.constant 0 : i32
    return %c0_i32, %c0_i32_0 : i32, i32
  }
  func.func @transform_26(%arg0: i32) -> (i32, i32) {
    %c0_i32 = arith.constant 0 : i32
    %c0_i32_0 = arith.constant 0 : i32
    %c0_i32_1 = arith.constant 0 : i32
    return %c0_i32, %c0_i32_0 : i32, i32
  }
  func.func @transform_27(%arg0: i32) -> (i32, i32) {
    %c0_i32 = arith.constant 0 : i32
    %c0_i32_0 = arith.constant 0 : i32
    %c0_i32_1 = arith.constant 0 : i32
    return %c0_i32, %c0_i32_0 : i32, i32
  }
  func.func @transform_28(%arg0: i32) -> (i32, i32) {
    %c0_i32 = arith.constant 0 : i32
    %c0_i32_0 = arith.constant 0 : i32
    %c0_i32_1 = arith.constant 0 : i32
    return %c0_i32, %c0_i32_0 : i32, i32
  }
  func.func @transform_29(%arg0: i32) -> (i32, i32) {
    %c0_i32 = arith.constant 0 : i32
    %c0_i32_0 = arith.constant 0 : i32
    %c0_i32_1 = arith.constant 0 : i32
    return %c0_i32, %c0_i32_0 : i32, i32
  }
  func.func @transform_30(%arg0: i32) -> (i32, i32, i32) {
    %c0_i32 = arith.constant 0 : i32
    %c0_i32_0 = arith.constant 0 : i32
    %c0_i32_1 = arith.constant 0 : i32
    return %arg0, %c0_i32, %c0_i32_0 : i32, i32, i32
  }
}

</mosaic_0001>

<llo_original>
// kernel: tpu_custom_call.1
$region0: #{tpu_custom_call.1}
  #allocation0 [shape = 'u32[]', space=smem, size = 0x4, offset = 0x4, fixed_abs, tag = 'smem constant byte address 0x4 - core index']
  #allocation1 [shape = 'u32[72,128]{1,0:T(1,128)}', space=vmem, size = 0x9000, scoped, tag = 'internal scratch']
  %s0 = inlined_call_operand.smem [shape: u32[31], index: -1, kind: input, shape index: {}]
  %s1 = sld [smem:[%s0]]
  %s2 = scalar_lea.smem %s0, 1
  %s3 = sld [smem:[%s2]]
  %s4 = scalar_lea.smem %s0, 2
  %s5 = sld [smem:[%s4]]
  %s6 = scalar_lea.smem %s0, 3
  %s7 = sld [smem:[%s6]]
  %s8 = scalar_lea.smem %s0, 4
  %s9 = sld [smem:[%s8]]
  %s10 = scalar_lea.smem %s0, 5
  %s11 = sld [smem:[%s10]]
  %s12 = scalar_lea.smem %s0, 6
  %s13 = sld [smem:[%s12]]
  %s14 = scalar_lea.smem %s0, 7
  %s15 = sld [smem:[%s14]]
  %s16 = scalar_lea.smem %s0, 8
  %s17 = sld [smem:[%s16]]
  %s18 = scalar_lea.smem %s0, 9
  %s19 = sld [smem:[%s18]]
  %s20 = scalar_lea.smem %s0, 10
  %s21 = sld [smem:[%s20]]
  %s22 = scalar_lea.smem %s0, 11
  %s23 = sld [smem:[%s22]]
  %s24 = scalar_lea.smem %s0, 12
  %s25 = sld [smem:[%s24]]
  %s26 = scalar_lea.smem %s0, 13
  %s27 = sld [smem:[%s26]]
  %s28 = scalar_lea.smem %s0, 14
  %s29 = sld [smem:[%s28]]
  %s30 = scalar_lea.smem %s0, 15
  %s31 = sld [smem:[%s30]]
  %s32 = scalar_lea.smem %s0, 16
  %s33 = sld [smem:[%s32]]
  %s34 = scalar_lea.smem %s0, 17
  %s35 = sld [smem:[%s34]]
  %s36 = scalar_lea.smem %s0, 18
  %s37 = sld [smem:[%s36]]
  %s38 = scalar_lea.smem %s0, 19
  %s39 = sld [smem:[%s38]]
  %s40 = scalar_lea.smem %s0, 20
  %s41 = sld [smem:[%s40]]
  %s42 = scalar_lea.smem %s0, 21
  %s43 = sld [smem:[%s42]]
  %s44 = scalar_lea.smem %s0, 22
  %s45 = sld [smem:[%s44]]
  %s46 = scalar_lea.smem %s0, 23
  %s47 = sld [smem:[%s46]]
  %s48 = scalar_lea.smem %s0, 24
  %s49 = sld [smem:[%s48]]
  %s50 = scalar_lea.smem %s0, 25
  %s51 = sld [smem:[%s50]]
  %s52 = scalar_lea.smem %s0, 26
  %s53 = sld [smem:[%s52]]
  %s54 = scalar_lea.smem %s0, 27
  %s55 = sld [smem:[%s54]]
  %s56 = scalar_lea.smem %s0, 28
  %s57 = sld [smem:[%s56]]
  %s58 = scalar_lea.smem %s0, 29
  %s59 = sld [smem:[%s58]]
  %s60 = scalar_lea.smem %s0, 30
  %s61 = sld [smem:[%s60]]
  %s62 = sld [smem:[#allocation0]]
  $region213: #{tpu_custom_call.1} parent=0
    _
  %s64 = ssub.s32 1, %s62
  %s65 = scalar_select 0, %s64, %s62
  $region1: #{tpu_custom_call.1} parent=0
    #allocation2 [shape = 'u8[16384]{0}', space=vmem, size = 0x4000, scoped, tag = 'input window, operand 0']
    #allocation3 [shape = 's32[2]{0}', space=sflag, size = 0x8, scoped, tag = 'scoped memory for tpu_custom_call.1']
    #allocation4 [shape = 's32[2]{0}', space=sflag, size = 0x8, scoped, tag = 'scoped memory for tpu_custom_call.1']
    #allocation5 [shape = 'u8[512]{0}', space=vmem, size = 0x400, scoped, tag = 'input window, operand 1, single buffered']
    #allocation6 [shape = 's32[1]{0}', space=sflag, size = 0x4, scoped, tag = 'scoped memory for tpu_custom_call.1']
    #allocation7 [shape = 'u8[32768]{0}', space=vmem, size = 0x8000, scoped, tag = 'input window, operand 3, single buffered']
    #allocation8 [shape = 'u8[32768]{0}', space=vmem, size = 0x8000, scoped, tag = 'input window, operand 5, single buffered']
    #allocation9 [shape = 's32[1]{0}', space=sflag, size = 0x4, scoped, tag = 'scoped memory for tpu_custom_call.1']
    #allocation10 [shape = 'u8[32768]{0}', space=vmem, size = 0x8000, scoped, tag = 'input window, operand 7, single buffered']
    #allocation11 [shape = 'u8[32768]{0}', space=vmem, size = 0x8000, scoped, tag = 'input window, operand 11, single buffered']
    #allocation12 [shape = 's32[1]{0}', space=sflag, size = 0x4, scoped, tag = 'scoped memory for tpu_custom_call.1']
    #allocation13 [shape = 'u8[32768]{0}', space=vmem, size = 0x8000, scoped, tag = 'input window, operand 12, single buffered']
    #allocation14 [shape = 'u8[32768]{0}', space=vmem, size = 0x8000, scoped, tag = 'input window, operand 13, single buffered']
    #allocation15 [shape = 's32[1]{0}', space=sflag, size = 0x4, scoped, tag = 'scoped memory for tpu_custom_call.1']
    #allocation16 [shape = 'u8[32768]{0}', space=vmem, size = 0x8000, scoped, tag = 'input window, operand 14, single buffered']
    #allocation17 [shape = 'u8[32768]{0}', space=vmem, size = 0x8000, scoped, tag = 'input window, operand 17, single buffered']
    #allocation18 [shape = 's32[1]{0}', space=sflag, size = 0x4, scoped, tag = 'scoped memory for tpu_custom_call.1']
    #allocation19 [shape = 'u8[32768]{0}', space=vmem, size = 0x8000, scoped, tag = 'input window, operand 19, single buffered']
    #allocation20 [shape = 'u8[32768]{0}', space=vmem, size = 0x8000, scoped, tag = 'input window, operand 23, single buffered']
    #allocation21 [shape = 's32[1]{0}', space=sflag, size = 0x4, scoped, tag = 'scoped memory for tpu_custom_call.1']
    #allocation22 [shape = 'u8[32768]{0}', space=vmem, size = 0x8000, scoped, tag = 'input window, operand 25, single buffered']
    #allocation23 [shape = 'u8[32768]{0}', space=vmem, size = 0x8000, scoped, tag = 'input window, operand 27, single buffered']
    #allocation24 [shape = 's32[1]{0}', space=sflag, size = 0x4, scoped, tag = 'scoped memory for tpu_custom_call.1']
    #allocation25 [shape = 'u8[32768]{0}', space=vmem, size = 0x8000, scoped, tag = 'input window, operand 29, single buffered']
    #allocation26 [shape = 'u8[16384]{0}', space=vmem, size = 0x4000, scoped, tag = 'output window, operand 0']
    %66 = vsyncpa [#allocation3], 0
    %s67 = scalar_lea.sflag [#allocation3], 1
    %68 = vsyncpa %s67, 0
    %69 = vsyncpa [#allocation6], 0
    %70 = vsyncpa [#allocation9], 0
    %71 = vsyncpa [#allocation12], 0
    %72 = vsyncpa [#allocation15], 0
    %73 = vsyncpa [#allocation18], 0
    %74 = vsyncpa [#allocation21], 0
    %75 = vsyncpa [#allocation24], 0
    %76 = vsyncpa [#allocation4], 0
    %s77 = scalar_lea.sflag [#allocation4], 1
    %78 = vsyncpa %s77, 0
    loop: start=0, step=1, limit=4
    $region2: #{tpu_custom_call.1} parent=1 // loop_pre_header
      _
    $region3: #{tpu_custom_call.1} parent=1 // loop_header
      %s80 = sphi 0, %s84
      %p81 = scmp.ge.s32.totalorder %s80, 4
      %s90 = sphi 0, %s92
      %s93 = sphi 0, %s90
      %s94 = sphi 0, %s93
      %s110 = sphi 0, %s94
      %s114 = sphi 0, %s114
      %s116 = sphi 0, %s114
      %s117 = sphi 0, %s116
      %s131 = sphi 0, %s117
      %s135 = sphi 0, %s135
      %s137 = sphi 0, %s135
      %s138 = sphi 0, %s137
      %s152 = sphi 0, %s138
      %s156 = sphi 0, %s156
      %s158 = sphi 0, %s156
      %s159 = sphi 0, %s158
      %s173 = sphi 0, %s159
      %s177 = sphi 0, %s177
      %s179 = sphi 0, %s177
      %s180 = sphi 0, %s179
      %s194 = sphi 0, %s180
      %s198 = sphi 0, %s198
      %s200 = sphi 0, %s198
      %s201 = sphi 0, %s200
      %s215 = sphi 0, %s201
      %s219 = sphi 0, %s219
      %s221 = sphi 0, %s219
      %s222 = sphi 0, %s221
      %s236 = sphi 0, %s222
      %s240 = sphi 0, %s240
      %s242 = sphi 0, %s240
      %s243 = sphi 0, %s242
      %s257 = sphi 0, %s243
      %s261 = sphi 0, %s261
      %s263 = sphi 0, %s261
      %s264 = sphi 0, %s263
      %s278 = sphi 0, %s264
      %s282 = sphi 0, %s282
      %s284 = sphi 0, %s282
      %s285 = sphi 0, %s284
      %s299 = sphi 0, %s285
      %s303 = sphi 0, %s303
      %s305 = sphi 0, %s303
      %s306 = sphi 0, %s305
      %s320 = sphi 0, %s306
      %s324 = sphi 0, %s324
      %s326 = sphi 0, %s324
      %s327 = sphi 0, %s326
      %s341 = sphi 0, %s327
      %s345 = sphi 0, %s345
      %s347 = sphi 0, %s345
      %s348 = sphi 0, %s347
      %s362 = sphi 0, %s348
      %s366 = sphi 0, %s366
      %s368 = sphi 0, %s366
      %s369 = sphi 0, %s368
      %s383 = sphi 0, %s369
      %s387 = sphi 0, %s387
      %s389 = sphi 0, %s387
      %s390 = sphi 0, %s389
      %s404 = sphi 0, %s390
      %s408 = sphi 0, %s408
      %s410 = sphi 0, %s408
      %s411 = sphi 0, %s410
      %s425 = sphi 0, %s411
      %s429 = sphi 0, %s429
      %s431 = sphi 0, %s429
      %s432 = sphi 0, %s431
      %s446 = sphi 0, %s432
      %s450 = sphi 0, %s450
      %s452 = sphi 0, %s450
      %s453 = sphi 0, %s452
      %s467 = sphi 0, %s453
      %s471 = sphi 0, %s471
      %s473 = sphi 0, %s471
      %s474 = sphi 0, %s473
      %s488 = sphi 0, %s474
      %s492 = sphi 0, %s492
      %s494 = sphi 0, %s492
      %s495 = sphi 0, %s494
      %s509 = sphi 0, %s495
      %s513 = sphi 0, %s513
      %s515 = sphi 0, %s513
      %s516 = sphi 0, %s515
      %s530 = sphi 0, %s516
      %s534 = sphi 0, %s534
      %s536 = sphi 0, %s534
      %s537 = sphi 0, %s536
      %s551 = sphi 0, %s537
      %s555 = sphi 0, %s555
      %s557 = sphi 0, %s555
      %s558 = sphi 0, %s557
      %s572 = sphi 0, %s558
      %s576 = sphi 0, %s576
      %s578 = sphi 0, %s576
      %s579 = sphi 0, %s578
      %s593 = sphi 0, %s579
      %s597 = sphi 0, %s597
      %s599 = sphi 0, %s597
      %s600 = sphi 0, %s599
      %s614 = sphi 0, %s600
      %s618 = sphi 0, %s618
      %s620 = sphi 0, %s618
      %s621 = sphi 0, %s620
      %s635 = sphi 0, %s621
      %s639 = sphi 0, %s639
      %s641 = sphi 0, %s639
      %s642 = sphi 0, %s641
      %s656 = sphi 0, %s642
      %s660 = sphi 0, %s660
      %s662 = sphi 0, %s660
      %s663 = sphi 0, %s662
      %s677 = sphi 0, %s663
      %s681 = sphi 0, %s681
      %s683 = sphi 0, %s681
      %s684 = sphi 0, %s683
      %s698 = sphi 0, %s684
      %s702 = sphi 0, %s702
      %s704 = sphi 0, %s702
      %s705 = sphi 0, %s704
      %s719 = sphi 0, %s705
      %s725 = sphi 0, %s727
      %s728 = sphi 0, %s725
      %s729 = sphi 0, %s728
      %s745 = sphi 0, %s729
    $region4: #{tpu_custom_call.1} parent=1 // loop_header_branch
      %83 = sbr.rel (%p81) target = $region8
    $region5: #{tpu_custom_call.1} parent=1 // loop_body
      %s85 = ssub.s32 %s80, 1
      %s86 = ssub.s32 %s80, 2
      %s87 = sadd.s32 %s80, 1
      %s88 = ssub.s32 %s80, %s87
      %p89 = scmp.eq.s32.totalorder %s88, 0
      %s91 = sadd.s32 %s90, 1
      %s92 = scalar_select %p89, %s90, %s91
      %p95 = pneg %p89
      %p96 = scmp.eq.s32.totalorder %s80, 1
      %p97 = por %p95, %p96
      %p98 = scmp.ne.s32.totalorder %s90, %s93
      %p99 = scmp.eq.s32.totalorder %s80, 0
      %p100 = por %p98, %p99
      %p101 = scmp.ne.s32.totalorder %s90, %s93
      %p102 = scmp.eq.s32.totalorder %s85, 1
      %p103 = por %p101, %p102
      %p104 = scmp.ne.s32.totalorder %s93, %s94
      %p105 = scmp.eq.s32.totalorder %s85, 0
      %p106 = por %p104, %p105
      %p107 = scmp.ne.s32.totalorder %s93, %s94
      %p108 = scmp.eq.s32.totalorder %s86, 1
      %p109 = por %p107, %p108
      %p111 = scmp.ne.s32.totalorder %s94, %s110
      %p112 = scmp.eq.s32.totalorder %s86, 0
      %p113 = por %p111, %p112
      %s115 = sadd.s32 %s114, 1
      %p118 = scmp.eq.s32.totalorder %s80, 1
      %p119 = scmp.ne.s32.totalorder %s114, %s116
      %p120 = scmp.eq.s32.totalorder %s80, 0
      %p121 = por %p119, %p120
      %p122 = scmp.ne.s32.totalorder %s114, %s116
      %p123 = scmp.eq.s32.totalorder %s85, 1
      %p124 = por %p122, %p123
      %p125 = scmp.ne.s32.totalorder %s116, %s117
      %p126 = scmp.eq.s32.totalorder %s85, 0
      %p127 = por %p125, %p126
      %p128 = scmp.ne.s32.totalorder %s116, %s117
      %p129 = scmp.eq.s32.totalorder %s86, 1
      %p130 = por %p128, %p129
      %p132 = scmp.ne.s32.totalorder %s117, %s131
      %p133 = scmp.eq.s32.totalorder %s86, 0
      %p134 = por %p132, %p133
      %s136 = sadd.s32 %s135, 1
      %p139 = scmp.eq.s32.totalorder %s80, 1
      %p140 = scmp.ne.s32.totalorder %s135, %s137
      %p141 = scmp.eq.s32.totalorder %s80, 0
      %p142 = por %p140, %p141
      %p143 = scmp.ne.s32.totalorder %s135, %s137
      %p144 = scmp.eq.s32.totalorder %s85, 1
      %p145 = por %p143, %p144
      %p146 = scmp.ne.s32.totalorder %s137, %s138
      %p147 = scmp.eq.s32.totalorder %s85, 0
      %p148 = por %p146, %p147
      %p149 = scmp.ne.s32.totalorder %s137, %s138
      %p150 = scmp.eq.s32.totalorder %s86, 1
      %p151 = por %p149, %p150
      %p153 = scmp.ne.s32.totalorder %s138, %s152
      %p154 = scmp.eq.s32.totalorder %s86, 0
      %p155 = por %p153, %p154
      %s157 = sadd.s32 %s156, 1
      %p160 = scmp.eq.s32.totalorder %s80, 1
      %p161 = scmp.ne.s32.totalorder %s156, %s158
      %p162 = scmp.eq.s32.totalorder %s80, 0
      %p163 = por %p161, %p162
      %p164 = scmp.ne.s32.totalorder %s156, %s158
      %p165 = scmp.eq.s32.totalorder %s85, 1
      %p166 = por %p164, %p165
      %p167 = scmp.ne.s32.totalorder %s158, %s159
      %p168 = scmp.eq.s32.totalorder %s85, 0
      %p169 = por %p167, %p168
      %p170 = scmp.ne.s32.totalorder %s158, %s159
      %p171 = scmp.eq.s32.totalorder %s86, 1
      %p172 = por %p170, %p171
      %p174 = scmp.ne.s32.totalorder %s159, %s173
      %p175 = scmp.eq.s32.totalorder %s86, 0
      %p176 = por %p174, %p175
      %s178 = sadd.s32 %s177, 1
      %p181 = scmp.eq.s32.totalorder %s80, 1
      %p182 = scmp.ne.s32.totalorder %s177, %s179
      %p183 = scmp.eq.s32.totalorder %s80, 0
      %p184 = por %p182, %p183
      %p185 = scmp.ne.s32.totalorder %s177, %s179
      %p186 = scmp.eq.s32.totalorder %s85, 1
      %p187 = por %p185, %p186
      %p188 = scmp.ne.s32.totalorder %s179, %s180
      %p189 = scmp.eq.s32.totalorder %s85, 0
      %p190 = por %p188, %p189
      %p191 = scmp.ne.s32.totalorder %s179, %s180
      %p192 = scmp.eq.s32.totalorder %s86, 1
      %p193 = por %p191, %p192
      %p195 = scmp.ne.s32.totalorder %s180, %s194
      %p196 = scmp.eq.s32.totalorder %s86, 0
      %p197 = por %p195, %p196
      %s199 = sadd.s32 %s198, 1
      %p202 = scmp.eq.s32.totalorder %s80, 1
      %p203 = scmp.ne.s32.totalorder %s198, %s200
      %p204 = scmp.eq.s32.totalorder %s80, 0
      %p205 = por %p203, %p204
      %p206 = scmp.ne.s32.totalorder %s198, %s200
      %p207 = scmp.eq.s32.totalorder %s85, 1
      %p208 = por %p206, %p207
      %p209 = scmp.ne.s32.totalorder %s200, %s201
      %p210 = scmp.eq.s32.totalorder %s85, 0
      %p211 = por %p209, %p210
      %p212 = scmp.ne.s32.totalorder %s200, %s201
      %p213 = scmp.eq.s32.totalorder %s86, 1
      %p214 = por %p212, %p213
      %p216 = scmp.ne.s32.totalorder %s201, %s215
      %p217 = scmp.eq.s32.totalorder %s86, 0
      %p218 = por %p216, %p217
      %s220 = sadd.s32 %s219, 1
      %p223 = scmp.eq.s32.totalorder %s80, 1
      %p224 = scmp.ne.s32.totalorder %s219, %s221
      %p225 = scmp.eq.s32.totalorder %s80, 0
      %p226 = por %p224, %p225
      %p227 = scmp.ne.s32.totalorder %s219, %s221
      %p228 = scmp.eq.s32.totalorder %s85, 1
      %p229 = por %p227, %p228
      %p230 = scmp.ne.s32.totalorder %s221, %s222
      %p231 = scmp.eq.s32.totalorder %s85, 0
      %p232 = por %p230, %p231
      %p233 = scmp.ne.s32.totalorder %s221, %s222
      %p234 = scmp.eq.s32.totalorder %s86, 1
      %p235 = por %p233, %p234
      %p237 = scmp.ne.s32.totalorder %s222, %s236
      %p238 = scmp.eq.s32.totalorder %s86, 0
      %p239 = por %p237, %p238
      %s241 = sadd.s32 %s240, 1
      %p244 = scmp.eq.s32.totalorder %s80, 1
      %p245 = scmp.ne.s32.totalorder %s240, %s242
      %p246 = scmp.eq.s32.totalorder %s80, 0
      %p247 = por %p245, %p246
      %p248 = scmp.ne.s32.totalorder %s240, %s242
      %p249 = scmp.eq.s32.totalorder %s85, 1
      %p250 = por %p248, %p249
      %p251 = scmp.ne.s32.totalorder %s242, %s243
      %p252 = scmp.eq.s32.totalorder %s85, 0
      %p253 = por %p251, %p252
      %p254 = scmp.ne.s32.totalorder %s242, %s243
      %p255 = scmp.eq.s32.totalorder %s86, 1
      %p256 = por %p254, %p255
      %p258 = scmp.ne.s32.totalorder %s243, %s257
      %p259 = scmp.eq.s32.totalorder %s86, 0
      %p260 = por %p258, %p259
      %s262 = sadd.s32 %s261, 1
      %p265 = scmp.eq.s32.totalorder %s80, 1
      %p266 = scmp.ne.s32.totalorder %s261, %s263
      %p267 = scmp.eq.s32.totalorder %s80, 0
      %p268 = por %p266, %p267
      %p269 = scmp.ne.s32.totalorder %s261, %s263
      %p270 = scmp.eq.s32.totalorder %s85, 1
      %p271 = por %p269, %p270
      %p272 = scmp.ne.s32.totalorder %s263, %s264
      %p273 = scmp.eq.s32.totalorder %s85, 0
      %p274 = por %p272, %p273
      %p275 = scmp.ne.s32.totalorder %s263, %s264
      %p276 = scmp.eq.s32.totalorder %s86, 1
      %p277 = por %p275, %p276
      %p279 = scmp.ne.s32.totalorder %s264, %s278
      %p280 = scmp.eq.s32.totalorder %s86, 0
      %p281 = por %p279, %p280
      %s283 = sadd.s32 %s282, 1
      %p286 = scmp.eq.s32.totalorder %s80, 1
      %p287 = scmp.ne.s32.totalorder %s282, %s284
      %p288 = scmp.eq.s32.totalorder %s80, 0
      %p289 = por %p287, %p288
      %p290 = scmp.ne.s32.totalorder %s282, %s284
      %p291 = scmp.eq.s32.totalorder %s85, 1
      %p292 = por %p290, %p291
      %p293 = scmp.ne.s32.totalorder %s284, %s285
      %p294 = scmp.eq.s32.totalorder %s85, 0
      %p295 = por %p293, %p294
      %p296 = scmp.ne.s32.totalorder %s284, %s285
      %p297 = scmp.eq.s32.totalorder %s86, 1
      %p298 = por %p296, %p297
      %p300 = scmp.ne.s32.totalorder %s285, %s299
      %p301 = scmp.eq.s32.totalorder %s86, 0
      %p302 = por %p300, %p301
      %s304 = sadd.s32 %s303, 1
      %p307 = scmp.eq.s32.totalorder %s80, 1
      %p308 = scmp.ne.s32.totalorder %s303, %s305
      %p309 = scmp.eq.s32.totalorder %s80, 0
      %p310 = por %p308, %p309
      %p311 = scmp.ne.s32.totalorder %s303, %s305
      %p312 = scmp.eq.s32.totalorder %s85, 1
      %p313 = por %p311, %p312
      %p314 = scmp.ne.s32.totalorder %s305, %s306
      %p315 = scmp.eq.s32.totalorder %s85, 0
      %p316 = por %p314, %p315
      %p317 = scmp.ne.s32.totalorder %s305, %s306
      %p318 = scmp.eq.s32.totalorder %s86, 1
      %p319 = por %p317, %p318
      %p321 = scmp.ne.s32.totalorder %s306, %s320
      %p322 = scmp.eq.s32.totalorder %s86, 0
      %p323 = por %p321, %p322
      %s325 = sadd.s32 %s324, 1
      %p328 = scmp.eq.s32.totalorder %s80, 1
      %p329 = scmp.ne.s32.totalorder %s324, %s326
      %p330 = scmp.eq.s32.totalorder %s80, 0
      %p331 = por %p329, %p330
      %p332 = scmp.ne.s32.totalorder %s324, %s326
      %p333 = scmp.eq.s32.totalorder %s85, 1
      %p334 = por %p332, %p333
      %p335 = scmp.ne.s32.totalorder %s326, %s327
      %p336 = scmp.eq.s32.totalorder %s85, 0
      %p337 = por %p335, %p336
      %p338 = scmp.ne.s32.totalorder %s326, %s327
      %p339 = scmp.eq.s32.totalorder %s86, 1
      %p340 = por %p338, %p339
      %p342 = scmp.ne.s32.totalorder %s327, %s341
      %p343 = scmp.eq.s32.totalorder %s86, 0
      %p344 = por %p342, %p343
      %s346 = sadd.s32 %s345, 1
      %p349 = scmp.eq.s32.totalorder %s80, 1
      %p350 = scmp.ne.s32.totalorder %s345, %s347
      %p351 = scmp.eq.s32.totalorder %s80, 0
      %p352 = por %p350, %p351
      %p353 = scmp.ne.s32.totalorder %s345, %s347
      %p354 = scmp.eq.s32.totalorder %s85, 1
      %p355 = por %p353, %p354
      %p356 = scmp.ne.s32.totalorder %s347, %s348
      %p357 = scmp.eq.s32.totalorder %s85, 0
      %p358 = por %p356, %p357
      %p359 = scmp.ne.s32.totalorder %s347, %s348
      %p360 = scmp.eq.s32.totalorder %s86, 1
      %p361 = por %p359, %p360
      %p363 = scmp.ne.s32.totalorder %s348, %s362
      %p364 = scmp.eq.s32.totalorder %s86, 0
      %p365 = por %p363, %p364
      %s367 = sadd.s32 %s366, 1
      %p370 = scmp.eq.s32.totalorder %s80, 1
      %p371 = scmp.ne.s32.totalorder %s366, %s368
      %p372 = scmp.eq.s32.totalorder %s80, 0
      %p373 = por %p371, %p372
      %p374 = scmp.ne.s32.totalorder %s366, %s368
      %p375 = scmp.eq.s32.totalorder %s85, 1
      %p376 = por %p374, %p375
      %p377 = scmp.ne.s32.totalorder %s368, %s369
      %p378 = scmp.eq.s32.totalorder %s85, 0
      %p379 = por %p377, %p378
      %p380 = scmp.ne.s32.totalorder %s368, %s369
      %p381 = scmp.eq.s32.totalorder %s86, 1
      %p382 = por %p380, %p381
      %p384 = scmp.ne.s32.totalorder %s369, %s383
      %p385 = scmp.eq.s32.totalorder %s86, 0
      %p386 = por %p384, %p385
      %s388 = sadd.s32 %s387, 1
      %p391 = scmp.eq.s32.totalorder %s80, 1
      %p392 = scmp.ne.s32.totalorder %s387, %s389
      %p393 = scmp.eq.s32.totalorder %s80, 0
      %p394 = por %p392, %p393
      %p395 = scmp.ne.s32.totalorder %s387, %s389
      %p396 = scmp.eq.s32.totalorder %s85, 1
      %p397 = por %p395, %p396
      %p398 = scmp.ne.s32.totalorder %s389, %s390
      %p399 = scmp.eq.s32.totalorder %s85, 0
      %p400 = por %p398, %p399
      %p401 = scmp.ne.s32.totalorder %s389, %s390
      %p402 = scmp.eq.s32.totalorder %s86, 1
      %p403 = por %p401, %p402
      %p405 = scmp.ne.s32.totalorder %s390, %s404
      %p406 = scmp.eq.s32.totalorder %s86, 0
      %p407 = por %p405, %p406
      %s409 = sadd.s32 %s408, 1
      %p412 = scmp.eq.s32.totalorder %s80, 1
      %p413 = scmp.ne.s32.totalorder %s408, %s410
      %p414 = scmp.eq.s32.totalorder %s80, 0
      %p415 = por %p413, %p414
      %p416 = scmp.ne.s32.totalorder %s408, %s410
      %p417 = scmp.eq.s32.totalorder %s85, 1
      %p418 = por %p416, %p417
      %p419 = scmp.ne.s32.totalorder %s410, %s411
      %p420 = scmp.eq.s32.totalorder %s85, 0
      %p421 = por %p419, %p420
      %p422 = scmp.ne.s32.totalorder %s410, %s411
      %p423 = scmp.eq.s32.totalorder %s86, 1
      %p424 = por %p422, %p423
      %p426 = scmp.ne.s32.totalorder %s411, %s425
      %p427 = scmp.eq.s32.totalorder %s86, 0
      %p428 = por %p426, %p427
      %s430 = sadd.s32 %s429, 1
      %p433 = scmp.eq.s32.totalorder %s80, 1
      %p434 = scmp.ne.s32.totalorder %s429, %s431
      %p435 = scmp.eq.s32.totalorder %s80, 0
      %p436 = por %p434, %p435
      %p437 = scmp.ne.s32.totalorder %s429, %s431
      %p438 = scmp.eq.s32.totalorder %s85, 1
      %p439 = por %p437, %p438
      %p440 = scmp.ne.s32.totalorder %s431, %s432
      %p441 = scmp.eq.s32.totalorder %s85, 0
      %p442 = por %p440, %p441
      %p443 = scmp.ne.s32.totalorder %s431, %s432
      %p444 = scmp.eq.s32.totalorder %s86, 1
      %p445 = por %p443, %p444
      %p447 = scmp.ne.s32.totalorder %s432, %s446
      %p448 = scmp.eq.s32.totalorder %s86, 0
      %p449 = por %p447, %p448
      %s451 = sadd.s32 %s450, 1
      %p454 = scmp.eq.s32.totalorder %s80, 1
      %p455 = scmp.ne.s32.totalorder %s450, %s452
      %p456 = scmp.eq.s32.totalorder %s80, 0
      %p457 = por %p455, %p456
      %p458 = scmp.ne.s32.totalorder %s450, %s452
      %p459 = scmp.eq.s32.totalorder %s85, 1
      %p460 = por %p458, %p459
      %p461 = scmp.ne.s32.totalorder %s452, %s453
      %p462 = scmp.eq.s32.totalorder %s85, 0
      %p463 = por %p461, %p462
      %p464 = scmp.ne.s32.totalorder %s452, %s453
      %p465 = scmp.eq.s32.totalorder %s86, 1
      %p466 = por %p464, %p465
      %p468 = scmp.ne.s32.totalorder %s453, %s467
      %p469 = scmp.eq.s32.totalorder %s86, 0
      %p470 = por %p468, %p469
      %s472 = sadd.s32 %s471, 1
      %p475 = scmp.eq.s32.totalorder %s80, 1
      %p476 = scmp.ne.s32.totalorder %s471, %s473
      %p477 = scmp.eq.s32.totalorder %s80, 0
      %p478 = por %p476, %p477
      %p479 = scmp.ne.s32.totalorder %s471, %s473
      %p480 = scmp.eq.s32.totalorder %s85, 1
      %p481 = por %p479, %p480
      %p482 = scmp.ne.s32.totalorder %s473, %s474
      %p483 = scmp.eq.s32.totalorder %s85, 0
      %p484 = por %p482, %p483
      %p485 = scmp.ne.s32.totalorder %s473, %s474
      %p486 = scmp.eq.s32.totalorder %s86, 1
      %p487 = por %p485, %p486
      %p489 = scmp.ne.s32.totalorder %s474, %s488
      %p490 = scmp.eq.s32.totalorder %s86, 0
      %p491 = por %p489, %p490
      %s493 = sadd.s32 %s492, 1
      %p496 = scmp.eq.s32.totalorder %s80, 1
      %p497 = scmp.ne.s32.totalorder %s492, %s494
      %p498 = scmp.eq.s32.totalorder %s80, 0
      %p499 = por %p497, %p498
      %p500 = scmp.ne.s32.totalorder %s492, %s494
      %p501 = scmp.eq.s32.totalorder %s85, 1
      %p502 = por %p500, %p501
      %p503 = scmp.ne.s32.totalorder %s494, %s495
      %p504 = scmp.eq.s32.totalorder %s85, 0
      %p505 = por %p503, %p504
      %p506 = scmp.ne.s32.totalorder %s494, %s495
      %p507 = scmp.eq.s32.totalorder %s86, 1
      %p508 = por %p506, %p507
      %p510 = scmp.ne.s32.totalorder %s495, %s509
      %p511 = scmp.eq.s32.totalorder %s86, 0
      %p512 = por %p510, %p511
      %s514 = sadd.s32 %s513, 1
      %p517 = scmp.eq.s32.totalorder %s80, 1
      %p518 = scmp.ne.s32.totalorder %s513, %s515
      %p519 = scmp.eq.s32.totalorder %s80, 0
      %p520 = por %p518, %p519
      %p521 = scmp.ne.s32.totalorder %s513, %s515
      %p522 = scmp.eq.s32.totalorder %s85, 1
      %p523 = por %p521, %p522
      %p524 = scmp.ne.s32.totalorder %s515, %s516
      %p525 = scmp.eq.s32.totalorder %s85, 0
      %p526 = por %p524, %p525
      %p527 = scmp.ne.s32.totalorder %s515, %s516
      %p528 = scmp.eq.s32.totalorder %s86, 1
      %p529 = por %p527, %p528
      %p531 = scmp.ne.s32.totalorder %s516, %s530
      %p532 = scmp.eq.s32.totalorder %s86, 0
      %p533 = por %p531, %p532
      %s535 = sadd.s32 %s534, 1
      %p538 = scmp.eq.s32.totalorder %s80, 1
      %p539 = scmp.ne.s32.totalorder %s534, %s536
      %p540 = scmp.eq.s32.totalorder %s80, 0
      %p541 = por %p539, %p540
      %p542 = scmp.ne.s32.totalorder %s534, %s536
      %p543 = scmp.eq.s32.totalorder %s85, 1
      %p544 = por %p542, %p543
      %p545 = scmp.ne.s32.totalorder %s536, %s537
      %p546 = scmp.eq.s32.totalorder %s85, 0
      %p547 = por %p545, %p546
      %p548 = scmp.ne.s32.totalorder %s536, %s537
      %p549 = scmp.eq.s32.totalorder %s86, 1
      %p550 = por %p548, %p549
      %p552 = scmp.ne.s32.totalorder %s537, %s551
      %p553 = scmp.eq.s32.totalorder %s86, 0
      %p554 = por %p552, %p553
      %s556 = sadd.s32 %s555, 1
      %p559 = scmp.eq.s32.totalorder %s80, 1
      %p560 = scmp.ne.s32.totalorder %s555, %s557
      %p561 = scmp.eq.s32.totalorder %s80, 0
      %p562 = por %p560, %p561
      %p563 = scmp.ne.s32.totalorder %s555, %s557
      %p564 = scmp.eq.s32.totalorder %s85, 1
      %p565 = por %p563, %p564
      %p566 = scmp.ne.s32.totalorder %s557, %s558
      %p567 = scmp.eq.s32.totalorder %s85, 0
      %p568 = por %p566, %p567
      %p569 = scmp.ne.s32.totalorder %s557, %s558
      %p570 = scmp.eq.s32.totalorder %s86, 1
      %p571 = por %p569, %p570
      %p573 = scmp.ne.s32.totalorder %s558, %s572
      %p574 = scmp.eq.s32.totalorder %s86, 0
      %p575 = por %p573, %p574
      %s577 = sadd.s32 %s576, 1
      %p580 = scmp.eq.s32.totalorder %s80, 1
      %p581 = scmp.ne.s32.totalorder %s576, %s578
      %p582 = scmp.eq.s32.totalorder %s80, 0
      %p583 = por %p581, %p582
      %p584 = scmp.ne.s32.totalorder %s576, %s578
      %p585 = scmp.eq.s32.totalorder %s85, 1
      %p586 = por %p584, %p585
      %p587 = scmp.ne.s32.totalorder %s578, %s579
      %p588 = scmp.eq.s32.totalorder %s85, 0
      %p589 = por %p587, %p588
      %p590 = scmp.ne.s32.totalorder %s578, %s579
      %p591 = scmp.eq.s32.totalorder %s86, 1
      %p592 = por %p590, %p591
      %p594 = scmp.ne.s32.totalorder %s579, %s593
      %p595 = scmp.eq.s32.totalorder %s86, 0
      %p596 = por %p594, %p595
      %s598 = sadd.s32 %s597, 1
      %p601 = scmp.eq.s32.totalorder %s80, 1
      %p602 = scmp.ne.s32.totalorder %s597, %s599
      %p603 = scmp.eq.s32.totalorder %s80, 0
      %p604 = por %p602, %p603
      %p605 = scmp.ne.s32.totalorder %s597, %s599
      %p606 = scmp.eq.s32.totalorder %s85, 1
      %p607 = por %p605, %p606
      %p608 = scmp.ne.s32.totalorder %s599, %s600
      %p609 = scmp.eq.s32.totalorder %s85, 0
      %p610 = por %p608, %p609
      %p611 = scmp.ne.s32.totalorder %s599, %s600
      %p612 = scmp.eq.s32.totalorder %s86, 1
      %p613 = por %p611, %p612
      %p615 = scmp.ne.s32.totalorder %s600, %s614
      %p616 = scmp.eq.s32.totalorder %s86, 0
      %p617 = por %p615, %p616
      %s619 = sadd.s32 %s618, 1
      %p622 = scmp.eq.s32.totalorder %s80, 1
      %p623 = scmp.ne.s32.totalorder %s618, %s620
      %p624 = scmp.eq.s32.totalorder %s80, 0
      %p625 = por %p623, %p624
      %p626 = scmp.ne.s32.totalorder %s618, %s620
      %p627 = scmp.eq.s32.totalorder %s85, 1
      %p628 = por %p626, %p627
      %p629 = scmp.ne.s32.totalorder %s620, %s621
      %p630 = scmp.eq.s32.totalorder %s85, 0
      %p631 = por %p629, %p630
      %p632 = scmp.ne.s32.totalorder %s620, %s621
      %p633 = scmp.eq.s32.totalorder %s86, 1
      %p634 = por %p632, %p633
      %p636 = scmp.ne.s32.totalorder %s621, %s635
      %p637 = scmp.eq.s32.totalorder %s86, 0
      %p638 = por %p636, %p637
      %s640 = sadd.s32 %s639, 1
      %p643 = scmp.eq.s32.totalorder %s80, 1
      %p644 = scmp.ne.s32.totalorder %s639, %s641
      %p645 = scmp.eq.s32.totalorder %s80, 0
      %p646 = por %p644, %p645
      %p647 = scmp.ne.s32.totalorder %s639, %s641
      %p648 = scmp.eq.s32.totalorder %s85, 1
      %p649 = por %p647, %p648
      %p650 = scmp.ne.s32.totalorder %s641, %s642
      %p651 = scmp.eq.s32.totalorder %s85, 0
      %p652 = por %p650, %p651
      %p653 = scmp.ne.s32.totalorder %s641, %s642
      %p654 = scmp.eq.s32.totalorder %s86, 1
      %p655 = por %p653, %p654
      %p657 = scmp.ne.s32.totalorder %s642, %s656
      %p658 = scmp.eq.s32.totalorder %s86, 0
      %p659 = por %p657, %p658
      %s661 = sadd.s32 %s660, 1
      %p664 = scmp.eq.s32.totalorder %s80, 1
      %p665 = scmp.ne.s32.totalorder %s660, %s662
      %p666 = scmp.eq.s32.totalorder %s80, 0
      %p667 = por %p665, %p666
      %p668 = scmp.ne.s32.totalorder %s660, %s662
      %p669 = scmp.eq.s32.totalorder %s85, 1
      %p670 = por %p668, %p669
      %p671 = scmp.ne.s32.totalorder %s662, %s663
      %p672 = scmp.eq.s32.totalorder %s85, 0
      %p673 = por %p671, %p672
      %p674 = scmp.ne.s32.totalorder %s662, %s663
      %p675 = scmp.eq.s32.totalorder %s86, 1
      %p676 = por %p674, %p675
      %p678 = scmp.ne.s32.totalorder %s663, %s677
      %p679 = scmp.eq.s32.totalorder %s86, 0
      %p680 = por %p678, %p679
      %s682 = sadd.s32 %s681, 1
      %p685 = scmp.eq.s32.totalorder %s80, 1
      %p686 = scmp.ne.s32.totalorder %s681, %s683
      %p687 = scmp.eq.s32.totalorder %s80, 0
      %p688 = por %p686, %p687
      %p689 = scmp.ne.s32.totalorder %s681, %s683
      %p690 = scmp.eq.s32.totalorder %s85, 1
      %p691 = por %p689, %p690
      %p692 = scmp.ne.s32.totalorder %s683, %s684
      %p693 = scmp.eq.s32.totalorder %s85, 0
      %p694 = por %p692, %p693
      %p695 = scmp.ne.s32.totalorder %s683, %s684
      %p696 = scmp.eq.s32.totalorder %s86, 1
      %p697 = por %p695, %p696
      %p699 = scmp.ne.s32.totalorder %s684, %s698
      %p700 = scmp.eq.s32.totalorder %s86, 0
      %p701 = por %p699, %p700
      %s703 = sadd.s32 %s702, 1
      %p706 = scmp.eq.s32.totalorder %s80, 1
      %p707 = scmp.ne.s32.totalorder %s702, %s704
      %p708 = scmp.eq.s32.totalorder %s80, 0
      %p709 = por %p707, %p708
      %p710 = scmp.ne.s32.totalorder %s702, %s704
      %p711 = scmp.eq.s32.totalorder %s85, 1
      %p712 = por %p710, %p711
      %p713 = scmp.ne.s32.totalorder %s704, %s705
      %p714 = scmp.eq.s32.totalorder %s85, 0
      %p715 = por %p713, %p714
      %p716 = scmp.ne.s32.totalorder %s704, %s705
      %p717 = scmp.eq.s32.totalorder %s86, 1
      %p718 = por %p716, %p717
      %p720 = scmp.ne.s32.totalorder %s705, %s719
      %p721 = scmp.eq.s32.totalorder %s86, 0
      %p722 = por %p720, %p721
      %s723 = ssub.s32 %s80, %s87
      %p724 = scmp.eq.s32.totalorder %s723, 0
      %s726 = sadd.s32 %s725, 1
      %s727 = scalar_select %p724, %s725, %s726
      %p730 = pneg %p724
      %p731 = scmp.eq.s32.totalorder %s80, 1
      %p732 = por %p730, %p731
      %p733 = scmp.ne.s32.totalorder %s725, %s728
      %p734 = scmp.eq.s32.totalorder %s80, 0
      %p735 = por %p733, %p734
      %p736 = scmp.ne.s32.totalorder %s725, %s728
      %p737 = scmp.eq.s32.totalorder %s85, 1
      %p738 = por %p736, %p737
      %p739 = scmp.ne.s32.totalorder %s728, %s729
      %p740 = scmp.eq.s32.totalorder %s85, 0
      %p741 = por %p739, %p740
      %p742 = scmp.ne.s32.totalorder %s728, %s729
      %p743 = scmp.eq.s32.totalorder %s86, 1
      %p744 = por %p742, %p743
      %p746 = scmp.ne.s32.totalorder %s729, %s745
      %p747 = scmp.eq.s32.totalorder %s86, 0
      %p748 = por %p746, %p747
      %p749 = scmp.le.s32.totalorder 1, %s80
      %p750 = scmp.lt.s32.totalorder %s80, 3
      %p751 = pnand %p749, %p750
      %p752 = pneg %p751
      // Predicated region
      $region9: #{tpu_custom_call.1} parent=5 // pred_check
        _
      $region10: #{tpu_custom_call.1} parent=5 // pred_check_branch
        %754 = sbr.rel (%p751) target = $region12
      $region11: #{tpu_custom_call.1} parent=5 // pred_region
        %s755 = ssub.s32 %s80, 1
        // Predicated region
        $region13: #{tpu_custom_call.1} parent=11 // pred_check
          %p756 = pneg %p127
        $region14: #{tpu_custom_call.1} parent=11 // pred_check_branch
          %758 = sbr.rel (%p756) target = $region16
        $region15: #{tpu_custom_call.1} parent=11 // pred_region
          %760 = vsyncadd [#allocation6], 0
          %s762 = sshll.u32 %s3, 4
          %s763 = int_to_ptr.hbm [resolvable:$true] %s762
          %s764 = sshll.u32 [#allocation5], 4
          %s765 = int_to_ptr.vmem [resolvable:$true] %s764
          %767 = dma.hbm_to_vmem [thread:$0]  %s763, 16, %s765, [#allocation6]
        $region16: #{tpu_custom_call.1} parent=11 // pred_fallthru
          _
        // Predicated region
        $region17: #{tpu_custom_call.1} parent=11 // pred_check
          %p768 = pneg %p148
        $region18: #{tpu_custom_call.1} parent=11 // pred_check_branch
          %770 = sbr.rel (%p768) target = $region20
        $region19: #{tpu_custom_call.1} parent=11 // pred_region
          _
        $region20: #{tpu_custom_call.1} parent=11 // pred_fallthru
          _
        // Predicated region
        $region21: #{tpu_custom_call.1} parent=11 // pred_check
          %p771 = pneg %p169
        $region22: #{tpu_custom_call.1} parent=11 // pred_check_branch
          %773 = sbr.rel (%p771) target = $region24
        $region23: #{tpu_custom_call.1} parent=11 // pred_region
          %775 = vsyncadd [#allocation6], 0
          %s776 = sshll.u32 %s7, 4
          %s777 = int_to_ptr.hbm [resolvable:$true] %s776
          %s778 = sshll.u32 [#allocation7], 4
          %s779 = int_to_ptr.vmem [resolvable:$true] %s778
          %784 = dma.hbm_to_vmem [thread:$0]  %s777, 1024, %s779, [#allocation6], 64, 64, 4
        $region24: #{tpu_custom_call.1} parent=11 // pred_fallthru
          _
        // Predicated region
        $region25: #{tpu_custom_call.1} parent=11 // pred_check
          %p785 = pneg %p190
        $region26: #{tpu_custom_call.1} parent=11 // pred_check_branch
          %787 = sbr.rel (%p785) target = $region28
        $region27: #{tpu_custom_call.1} parent=11 // pred_region
          _
        $region28: #{tpu_custom_call.1} parent=11 // pred_fallthru
          _
        // Predicated region
        $region29: #{tpu_custom_call.1} parent=11 // pred_check
          %p788 = pneg %p211
        $region30: #{tpu_custom_call.1} parent=11 // pred_check_branch
          %790 = sbr.rel (%p788) target = $region32
        $region31: #{tpu_custom_call.1} parent=11 // pred_region
          %792 = vsyncadd [#allocation9], 0
          %s793 = sshll.u32 %s11, 4
          %s794 = int_to_ptr.hbm [resolvable:$true] %s793
          %s795 = sshll.u32 [#allocation8], 4
          %s796 = int_to_ptr.vmem [resolvable:$true] %s795
          %801 = dma.hbm_to_vmem [thread:$0]  %s794, 1024, %s796, [#allocation9], 64, 64, 4
        $region32: #{tpu_custom_call.1} parent=11 // pred_fallthru
          _
        // Predicated region
        $region33: #{tpu_custom_call.1} parent=11 // pred_check
          %p802 = pneg %p232
        $region34: #{tpu_custom_call.1} parent=11 // pred_check_branch
          %804 = sbr.rel (%p802) target = $region36
        $region35: #{tpu_custom_call.1} parent=11 // pred_region
          _
        $region36: #{tpu_custom_call.1} parent=11 // pred_fallthru
          _
        // Predicated region
        $region37: #{tpu_custom_call.1} parent=11 // pred_check
          %p805 = pneg %p253
        $region38: #{tpu_custom_call.1} parent=11 // pred_check_branch
          %807 = sbr.rel (%p805) target = $region40
        $region39: #{tpu_custom_call.1} parent=11 // pred_region
          %809 = vsyncadd [#allocation9], 0
          %s810 = sshll.u32 %s15, 4
          %s811 = int_to_ptr.hbm [resolvable:$true] %s810
          %s812 = sshll.u32 [#allocation10], 4
          %s813 = int_to_ptr.vmem [resolvable:$true] %s812
          %818 = dma.hbm_to_vmem [thread:$0]  %s811, 1024, %s813, [#allocation9], 64, 64, 4
        $region40: #{tpu_custom_call.1} parent=11 // pred_fallthru
          _
        // Predicated region
        $region41: #{tpu_custom_call.1} parent=11 // pred_check
          %p819 = pneg %p274
        $region42: #{tpu_custom_call.1} parent=11 // pred_check_branch
          %821 = sbr.rel (%p819) target = $region44
        $region43: #{tpu_custom_call.1} parent=11 // pred_region
          _
        $region44: #{tpu_custom_call.1} parent=11 // pred_fallthru
          _
        // Predicated region
        $region45: #{tpu_custom_call.1} parent=11 // pred_check
          %p822 = pneg %p295
        $region46: #{tpu_custom_call.1} parent=11 // pred_check_branch
          %824 = sbr.rel (%p822) target = $region48
        $region47: #{tpu_custom_call.1} parent=11 // pred_region
          _
        $region48: #{tpu_custom_call.1} parent=11 // pred_fallthru
          _
        // Predicated region
        $region49: #{tpu_custom_call.1} parent=11 // pred_check
          %p825 = pneg %p316
        $region50: #{tpu_custom_call.1} parent=11 // pred_check_branch
          %827 = sbr.rel (%p825) target = $region52
        $region51: #{tpu_custom_call.1} parent=11 // pred_region
          _
        $region52: #{tpu_custom_call.1} parent=11 // pred_fallthru
          _
        // Predicated region
        $region53: #{tpu_custom_call.1} parent=11 // pred_check
          %p828 = pneg %p337
        $region54: #{tpu_custom_call.1} parent=11 // pred_check_branch
          %830 = sbr.rel (%p828) target = $region56
        $region55: #{tpu_custom_call.1} parent=11 // pred_region
          %832 = vsyncadd [#allocation12], 0
          %s833 = sshll.u32 %s23, 4
          %s834 = int_to_ptr.hbm [resolvable:$true] %s833
          %s835 = sshll.u32 [#allocation11], 4
          %s836 = int_to_ptr.vmem [resolvable:$true] %s835
          %841 = dma.hbm_to_vmem [thread:$0]  %s834, 1024, %s836, [#allocation12], 64, 64, 4
        $region56: #{tpu_custom_call.1} parent=11 // pred_fallthru
          _
        // Predicated region
        $region57: #{tpu_custom_call.1} parent=11 // pred_check
          %p842 = pneg %p358
        $region58: #{tpu_custom_call.1} parent=11 // pred_check_branch
          %844 = sbr.rel (%p842) target = $region60
        $region59: #{tpu_custom_call.1} parent=11 // pred_region
          %846 = vsyncadd [#allocation12], 0
          %s847 = sshll.u32 %s25, 4
          %s848 = int_to_ptr.hbm [resolvable:$true] %s847
          %s849 = sshll.u32 [#allocation13], 4
          %s850 = int_to_ptr.vmem [resolvable:$true] %s849
          %855 = dma.hbm_to_vmem [thread:$0]  %s848, 1024, %s850, [#allocation12], 64, 64, 4
        $region60: #{tpu_custom_call.1} parent=11 // pred_fallthru
          _
        // Predicated region
        $region61: #{tpu_custom_call.1} parent=11 // pred_check
          %p856 = pneg %p379
        $region62: #{tpu_custom_call.1} parent=11 // pred_check_branch
          %858 = sbr.rel (%p856) target = $region64
        $region63: #{tpu_custom_call.1} parent=11 // pred_region
          %860 = vsyncadd [#allocation15], 0
          %s861 = sshll.u32 %s27, 4
          %s862 = int_to_ptr.hbm [resolvable:$true] %s861
          %s863 = sshll.u32 [#allocation14], 4
          %s864 = int_to_ptr.vmem [resolvable:$true] %s863
          %869 = dma.hbm_to_vmem [thread:$0]  %s862, 1024, %s864, [#allocation15], 64, 64, 4
        $region64: #{tpu_custom_call.1} parent=11 // pred_fallthru
          _
        // Predicated region
        $region65: #{tpu_custom_call.1} parent=11 // pred_check
          %p870 = pneg %p400
        $region66: #{tpu_custom_call.1} parent=11 // pred_check_branch
          %872 = sbr.rel (%p870) target = $region68
        $region67: #{tpu_custom_call.1} parent=11 // pred_region
          %874 = vsyncadd [#allocation15], 0
          %s875 = sshll.u32 %s29, 4
          %s876 = int_to_ptr.hbm [resolvable:$true] %s875
          %s877 = sshll.u32 [#allocation16], 4
          %s878 = int_to_ptr.vmem [resolvable:$true] %s877
          %883 = dma.hbm_to_vmem [thread:$0]  %s876, 1024, %s878, [#allocation15], 64, 64, 4
        $region68: #{tpu_custom_call.1} parent=11 // pred_fallthru
          _
        // Predicated region
        $region69: #{tpu_custom_call.1} parent=11 // pred_check
          %p884 = pneg %p421
        $region70: #{tpu_custom_call.1} parent=11 // pred_check_branch
          %886 = sbr.rel (%p884) target = $region72
        $region71: #{tpu_custom_call.1} parent=11 // pred_region
          _
        $region72: #{tpu_custom_call.1} parent=11 // pred_fallthru
          _
        // Predicated region
        $region73: #{tpu_custom_call.1} parent=11 // pred_check
          %p887 = pneg %p442
        $region74: #{tpu_custom_call.1} parent=11 // pred_check_branch
          %889 = sbr.rel (%p887) target = $region76
        $region75: #{tpu_custom_call.1} parent=11 // pred_region
          _
        $region76: #{tpu_custom_call.1} parent=11 // pred_fallthru
          _
        // Predicated region
        $region77: #{tpu_custom_call.1} parent=11 // pred_check
          %p890 = pneg %p463
        $region78: #{tpu_custom_call.1} parent=11 // pred_check_branch
          %892 = sbr.rel (%p890) target = $region80
        $region79: #{tpu_custom_call.1} parent=11 // pred_region
          %894 = vsyncadd [#allocation18], 0
          %s895 = sshll.u32 %s35, 4
          %s896 = int_to_ptr.hbm [resolvable:$true] %s895
          %s897 = sshll.u32 [#allocation17], 4
          %s898 = int_to_ptr.vmem [resolvable:$true] %s897
          %903 = dma.hbm_to_vmem [thread:$0]  %s896, 1024, %s898, [#allocation18], 64, 64, 4
        $region80: #{tpu_custom_call.1} parent=11 // pred_fallthru
          _
        // Predicated region
        $region81: #{tpu_custom_call.1} parent=11 // pred_check
          %p904 = pneg %p484
        $region82: #{tpu_custom_call.1} parent=11 // pred_check_branch
          %906 = sbr.rel (%p904) target = $region84
        $region83: #{tpu_custom_call.1} parent=11 // pred_region
          _
        $region84: #{tpu_custom_call.1} parent=11 // pred_fallthru
          _
        // Predicated region
        $region85: #{tpu_custom_call.1} parent=11 // pred_check
          %p907 = pneg %p505
        $region86: #{tpu_custom_call.1} parent=11 // pred_check_branch
          %909 = sbr.rel (%p907) target = $region88
        $region87: #{tpu_custom_call.1} parent=11 // pred_region
          %911 = vsyncadd [#allocation18], 0
          %s912 = sshll.u32 %s39, 4
          %s913 = int_to_ptr.hbm [resolvable:$true] %s912
          %s914 = sshll.u32 [#allocation19], 4
          %s915 = int_to_ptr.vmem [resolvable:$true] %s914
          %920 = dma.hbm_to_vmem [thread:$0]  %s913, 1024, %s915, [#allocation18], 64, 64, 4
        $region88: #{tpu_custom_call.1} parent=11 // pred_fallthru
          _
        // Predicated region
        $region89: #{tpu_custom_call.1} parent=11 // pred_check
          %p921 = pneg %p526
        $region90: #{tpu_custom_call.1} parent=11 // pred_check_branch
          %923 = sbr.rel (%p921) target = $region92
        $region91: #{tpu_custom_call.1} parent=11 // pred_region
          _
        $region92: #{tpu_custom_call.1} parent=11 // pred_fallthru
          _
        // Predicated region
        $region93: #{tpu_custom_call.1} parent=11 // pred_check
          %p924 = pneg %p547
        $region94: #{tpu_custom_call.1} parent=11 // pred_check_branch
          %926 = sbr.rel (%p924) target = $region96
        $region95: #{tpu_custom_call.1} parent=11 // pred_region
          _
        $region96: #{tpu_custom_call.1} parent=11 // pred_fallthru
          _
        // Predicated region
        $region97: #{tpu_custom_call.1} parent=11 // pred_check
          %p927 = pneg %p568
        $region98: #{tpu_custom_call.1} parent=11 // pred_check_branch
          %929 = sbr.rel (%p927) target = $region100
        $region99: #{tpu_custom_call.1} parent=11 // pred_region
          _
        $region100: #{tpu_custom_call.1} parent=11 // pred_fallthru
          _
        // Predicated region
        $region101: #{tpu_custom_call.1} parent=11 // pred_check
          %p930 = pneg %p589
        $region102: #{tpu_custom_call.1} parent=11 // pred_check_branch
          %932 = sbr.rel (%p930) target = $region104
        $region103: #{tpu_custom_call.1} parent=11 // pred_region
          %934 = vsyncadd [#allocation21], 0
          %s935 = sshll.u32 %s47, 4
          %s936 = int_to_ptr.hbm [resolvable:$true] %s935
          %s937 = sshll.u32 [#allocation20], 4
          %s938 = int_to_ptr.vmem [resolvable:$true] %s937
          %943 = dma.hbm_to_vmem [thread:$0]  %s936, 1024, %s938, [#allocation21], 64, 64, 4
        $region104: #{tpu_custom_call.1} parent=11 // pred_fallthru
          _
        // Predicated region
        $region105: #{tpu_custom_call.1} parent=11 // pred_check
          %p944 = pneg %p610
        $region106: #{tpu_custom_call.1} parent=11 // pred_check_branch
          %946 = sbr.rel (%p944) target = $region108
        $region107: #{tpu_custom_call.1} parent=11 // pred_region
          _
        $region108: #{tpu_custom_call.1} parent=11 // pred_fallthru
          _
        // Predicated region
        $region109: #{tpu_custom_call.1} parent=11 // pred_check
          %p947 = pneg %p631
        $region110: #{tpu_custom_call.1} parent=11 // pred_check_branch
          %949 = sbr.rel (%p947) target = $region112
        $region111: #{tpu_custom_call.1} parent=11 // pred_region
          %951 = vsyncadd [#allocation21], 0
          %s952 = sshll.u32 %s51, 4
          %s953 = int_to_ptr.hbm [resolvable:$true] %s952
          %s954 = sshll.u32 [#allocation22], 4
          %s955 = int_to_ptr.vmem [resolvable:$true] %s954
          %960 = dma.hbm_to_vmem [thread:$0]  %s953, 1024, %s955, [#allocation21], 64, 64, 4
        $region112: #{tpu_custom_call.1} parent=11 // pred_fallthru
          _
        // Predicated region
        $region113: #{tpu_custom_call.1} parent=11 // pred_check
          %p961 = pneg %p652
        $region114: #{tpu_custom_call.1} parent=11 // pred_check_branch
          %963 = sbr.rel (%p961) target = $region116
        $region115: #{tpu_custom_call.1} parent=11 // pred_region
          _
        $region116: #{tpu_custom_call.1} parent=11 // pred_fallthru
          _
        // Predicated region
        $region117: #{tpu_custom_call.1} parent=11 // pred_check
          %p964 = pneg %p673
        $region118: #{tpu_custom_call.1} parent=11 // pred_check_branch
          %966 = sbr.rel (%p964) target = $region120
        $region119: #{tpu_custom_call.1} parent=11 // pred_region
          %968 = vsyncadd [#allocation24], 0
          %s969 = sshll.u32 %s55, 4
          %s970 = int_to_ptr.hbm [resolvable:$true] %s969
          %s971 = sshll.u32 [#allocation23], 4
          %s972 = int_to_ptr.vmem [resolvable:$true] %s971
          %977 = dma.hbm_to_vmem [thread:$0]  %s970, 1024, %s972, [#allocation24], 64, 64, 4
        $region120: #{tpu_custom_call.1} parent=11 // pred_fallthru
          _
        // Predicated region
        $region121: #{tpu_custom_call.1} parent=11 // pred_check
          %p978 = pneg %p694
        $region122: #{tpu_custom_call.1} parent=11 // pred_check_branch
          %980 = sbr.rel (%p978) target = $region124
        $region123: #{tpu_custom_call.1} parent=11 // pred_region
          _
        $region124: #{tpu_custom_call.1} parent=11 // pred_fallthru
          _
        // Predicated region
        $region125: #{tpu_custom_call.1} parent=11 // pred_check
          %p981 = pneg %p715
        $region126: #{tpu_custom_call.1} parent=11 // pred_check_branch
          %983 = sbr.rel (%p981) target = $region128
        $region127: #{tpu_custom_call.1} parent=11 // pred_region
          %985 = vsyncadd [#allocation24], 0
          %s986 = sshll.u32 %s59, 4
          %s987 = int_to_ptr.hbm [resolvable:$true] %s986
          %s988 = sshll.u32 [#allocation25], 4
          %s989 = int_to_ptr.vmem [resolvable:$true] %s988
          %994 = dma.hbm_to_vmem [thread:$0]  %s987, 1024, %s989, [#allocation24], 64, 64, 4
        $region128: #{tpu_custom_call.1} parent=11 // pred_fallthru
          _
      $region12: #{tpu_custom_call.1} parent=5 // pred_fallthru
        _
      %p995 = scmp.lt.s32.totalorder %s80, 2
      // Predicated region
      $region129: #{tpu_custom_call.1} parent=5 // pred_check
        %p996 = pneg %p995
      $region130: #{tpu_custom_call.1} parent=5 // pred_check_branch
        %998 = sbr.rel (%p996) target = $region132
      $region131: #{tpu_custom_call.1} parent=5 // pred_region
        // Predicated region
        $region133: #{tpu_custom_call.1} parent=131 // pred_check
          %p999 = pneg %p100
        $region134: #{tpu_custom_call.1} parent=131 // pred_check_branch
          %1001 = sbr.rel (%p999) target = $region136
        $region135: #{tpu_custom_call.1} parent=131 // pred_region
          %s1002 = sand.u32 %s90, 1
          %s1003 = scalar_lea.sflag [#allocation3], %s1002
          %s1004 = sand.u32 %s90, 1
          %s1005 = smul.addr %s1004, 16
          %s1006 = scalar_lea.vmem [#allocation2], %s1005
          %1008 = vsyncadd %s1003, 0
          %s1009 = smul.addr %s80, 2
          %s1010 = smul.addr %s1009, 8
          %s1011 = scalar_lea.hbm %s1, %s1010
          %s1012 = sshll.u32 %s1011, 4
          %s1013 = int_to_ptr.hbm [resolvable:$true] %s1012
          %s1014 = sshll.u32 %s1006, 4
          %s1015 = int_to_ptr.vmem [resolvable:$true] %s1014
          %1020 = dma.hbm_to_vmem [thread:$0]  %s1013, 256, %s1015, %s1003, 128, 128, 8
        $region136: #{tpu_custom_call.1} parent=131 // pred_fallthru
          _
      $region132: #{tpu_custom_call.1} parent=5 // pred_fallthru
        _
      %p1021 = scmp.le.s32.totalorder 1, %s80
      %p1022 = scmp.lt.s32.totalorder %s80, 3
      %p1023 = pnand %p1021, %p1022
      %p1024 = pneg %p1023
      // Predicated region
      $region137: #{tpu_custom_call.1} parent=5 // pred_check
        _
      $region138: #{tpu_custom_call.1} parent=5 // pred_check_branch
        %1026 = sbr.rel (%p1023) target = $region140
      $region139: #{tpu_custom_call.1} parent=5 // pred_region
        %s1027 = ssub.s32 %s80, 1
        %s1028 = sand.u32 %s93, 1
        %s1029 = scalar_lea.sflag [#allocation3], %s1028
        %s1030 = sand.u32 %s93, 1
        %s1031 = smul.addr %s1030, 16
        %s1032 = scalar_lea.vmem [#allocation2], %s1031
        // Predicated region
        $region141: #{tpu_custom_call.1} parent=139 // pred_check
          %p1033 = pneg %p106
        $region142: #{tpu_custom_call.1} parent=139 // pred_check_branch
          %1035 = sbr.rel (%p1033) target = $region144
        $region143: #{tpu_custom_call.1} parent=139 // pred_region
          %1037 = dma.done %s1029, 256
        $region144: #{tpu_custom_call.1} parent=139 // pred_fallthru
          _
        // Predicated region
        $region145: #{tpu_custom_call.1} parent=139 // pred_check
          %p1038 = pneg %p127
        $region146: #{tpu_custom_call.1} parent=139 // pred_check_branch
          %1040 = sbr.rel (%p1038) target = $region148
        $region147: #{tpu_custom_call.1} parent=139 // pred_region
          %1042 = dma.done [#allocation6], 16
        $region148: #{tpu_custom_call.1} parent=139 // pred_fallthru
          _
        // Predicated region
        $region149: #{tpu_custom_call.1} parent=139 // pred_check
          %p1043 = pneg %p169
        $region150: #{tpu_custom_call.1} parent=139 // pred_check_branch
          %1045 = sbr.rel (%p1043) target = $region152
        $region151: #{tpu_custom_call.1} parent=139 // pred_region
          %1047 = dma.done [#allocation6], 1024
        $region152: #{tpu_custom_call.1} parent=139 // pred_fallthru
          _
        // Predicated region
        $region153: #{tpu_custom_call.1} parent=139 // pred_check
          %p1048 = pneg %p211
        $region154: #{tpu_custom_call.1} parent=139 // pred_check_branch
          %1050 = sbr.rel (%p1048) target = $region156
        $region155: #{tpu_custom_call.1} parent=139 // pred_region
          %1052 = dma.done [#allocation9], 1024
        $region156: #{tpu_custom_call.1} parent=139 // pred_fallthru
          _
        // Predicated region
        $region157: #{tpu_custom_call.1} parent=139 // pred_check
          %p1053 = pneg %p253
        $region158: #{tpu_custom_call.1} parent=139 // pred_check_branch
          %1055 = sbr.rel (%p1053) target = $region160
        $region159: #{tpu_custom_call.1} parent=139 // pred_region
          %1057 = dma.done [#allocation9], 1024
        $region160: #{tpu_custom_call.1} parent=139 // pred_fallthru
          _
        // Predicated region
        $region161: #{tpu_custom_call.1} parent=139 // pred_check
          %p1058 = pneg %p337
        $region162: #{tpu_custom_call.1} parent=139 // pred_check_branch
          %1060 = sbr.rel (%p1058) target = $region164
        $region163: #{tpu_custom_call.1} parent=139 // pred_region
          %1062 = dma.done [#allocation12], 1024
        $region164: #{tpu_custom_call.1} parent=139 // pred_fallthru
          _
        // Predicated region
        $region165: #{tpu_custom_call.1} parent=139 // pred_check
          %p1063 = pneg %p358
        $region166: #{tpu_custom_call.1} parent=139 // pred_check_branch
          %1065 = sbr.rel (%p1063) target = $region168
        $region167: #{tpu_custom_call.1} parent=139 // pred_region
          %1067 = dma.done [#allocation12], 1024
        $region168: #{tpu_custom_call.1} parent=139 // pred_fallthru
          _
        // Predicated region
        $region169: #{tpu_custom_call.1} parent=139 // pred_check
          %p1068 = pneg %p379
        $region170: #{tpu_custom_call.1} parent=139 // pred_check_branch
          %1070 = sbr.rel (%p1068) target = $region172
        $region171: #{tpu_custom_call.1} parent=139 // pred_region
          %1072 = dma.done [#allocation15], 1024
        $region172: #{tpu_custom_call.1} parent=139 // pred_fallthru
          _
        // Predicated region
        $region173: #{tpu_custom_call.1} parent=139 // pred_check
          %p1073 = pneg %p400
        $region174: #{tpu_custom_call.1} parent=139 // pred_check_branch
          %1075 = sbr.rel (%p1073) target = $region176
        $region175: #{tpu_custom_call.1} parent=139 // pred_region
          %1077 = dma.done [#allocation15], 1024
        $region176: #{tpu_custom_call.1} parent=139 // pred_fallthru
          _
        // Predicated region
        $region177: #{tpu_custom_call.1} parent=139 // pred_check
          %p1078 = pneg %p463
        $region178: #{tpu_custom_call.1} parent=139 // pred_check_branch
          %1080 = sbr.rel (%p1078) target = $region180
        $region179: #{tpu_custom_call.1} parent=139 // pred_region
          %1082 = dma.done [#allocation18], 1024
        $region180: #{tpu_custom_call.1} parent=139 // pred_fallthru
          _
        // Predicated region
        $region181: #{tpu_custom_call.1} parent=139 // pred_check
          %p1083 = pneg %p505
        $region182: #{tpu_custom_call.1} parent=139 // pred_check_branch
          %1085 = sbr.rel (%p1083) target = $region184
        $region183: #{tpu_custom_call.1} parent=139 // pred_region
          %1087 = dma.done [#allocation18], 1024
        $region184: #{tpu_custom_call.1} parent=139 // pred_fallthru
          _
        // Predicated region
        $region185: #{tpu_custom_call.1} parent=139 // pred_check
          %p1088 = pneg %p589
        $region186: #{tpu_custom_call.1} parent=139 // pred_check_branch
          %1090 = sbr.rel (%p1088) target = $region188
        $region187: #{tpu_custom_call.1} parent=139 // pred_region
          %1092 = dma.done [#allocation21], 1024
        $region188: #{tpu_custom_call.1} parent=139 // pred_fallthru
          _
        // Predicated region
        $region189: #{tpu_custom_call.1} parent=139 // pred_check
          %p1093 = pneg %p631
        $region190: #{tpu_custom_call.1} parent=139 // pred_check_branch
          %1095 = sbr.rel (%p1093) target = $region192
        $region191: #{tpu_custom_call.1} parent=139 // pred_region
          %1097 = dma.done [#allocation21], 1024
        $region192: #{tpu_custom_call.1} parent=139 // pred_fallthru
          _
        // Predicated region
        $region193: #{tpu_custom_call.1} parent=139 // pred_check
          %p1098 = pneg %p673
        $region194: #{tpu_custom_call.1} parent=139 // pred_check_branch
          %1100 = sbr.rel (%p1098) target = $region196
        $region195: #{tpu_custom_call.1} parent=139 // pred_region
          %1102 = dma.done [#allocation24], 1024
        $region196: #{tpu_custom_call.1} parent=139 // pred_fallthru
          _
        // Predicated region
        $region197: #{tpu_custom_call.1} parent=139 // pred_check
          %p1103 = pneg %p715
        $region198: #{tpu_custom_call.1} parent=139 // pred_check_branch
          %1105 = sbr.rel (%p1103) target = $region200
        $region199: #{tpu_custom_call.1} parent=139 // pred_region
          %1107 = dma.done [#allocation24], 1024
        $region200: #{tpu_custom_call.1} parent=139 // pred_fallthru
          _
        %s1108 = sand.u32 %s93, 1
        %s1109 = scalar_lea.sflag [#allocation3], %s1108
        %s1110 = sand.u32 %s93, 1
        %s1111 = smul.addr %s1110, 16
        %s1112 = scalar_lea.vmem [#allocation2], %s1111
        %p1113 = pneg %p106
        %p1114 = pneg %p103
        %p1115 = pneg %p127
        %p1116 = pneg %p124
        %p1117 = pneg %p148
        %p1118 = pneg %p145
        %p1119 = pneg %p169
        %p1120 = pneg %p166
        %p1121 = pneg %p190
        %p1122 = pneg %p187
        %p1123 = pneg %p211
        %p1124 = pneg %p208
        %p1125 = pneg %p232
        %p1126 = pneg %p229
        %p1127 = pneg %p253
        %p1128 = pneg %p250
        %p1129 = pneg %p274
        %p1130 = pneg %p271
        %p1131 = pneg %p295
        %p1132 = pneg %p292
        %p1133 = pneg %p316
        %p1134 = pneg %p313
        %p1135 = pneg %p337
        %p1136 = pneg %p334
        %p1137 = pneg %p358
        %p1138 = pneg %p355
        %p1139 = pneg %p379
        %p1140 = pneg %p376
        %p1141 = pneg %p400
        %p1142 = pneg %p397
        %p1143 = pneg %p421
        %p1144 = pneg %p418
        %p1145 = pneg %p442
        %p1146 = pneg %p439
        %p1147 = pneg %p463
        %p1148 = pneg %p460
        %p1149 = pneg %p484
        %p1150 = pneg %p481
        %p1151 = pneg %p505
        %p1152 = pneg %p502
        %p1153 = pneg %p526
        %p1154 = pneg %p523
        %p1155 = pneg %p547
        %p1156 = pneg %p544
        %p1157 = pneg %p568
        %p1158 = pneg %p565
        %p1159 = pneg %p589
        %p1160 = pneg %p586
        %p1161 = pneg %p610
        %p1162 = pneg %p607
        %p1163 = pneg %p631
        %p1164 = pneg %p628
        %p1165 = pneg %p652
        %p1166 = pneg %p649
        %p1167 = pneg %p673
        %p1168 = pneg %p670
        %p1169 = pneg %p694
        %p1170 = pneg %p691
        %p1171 = pneg %p715
        %p1172 = pneg %p712
        %p1173 = pneg %p741
        %p1174 = pneg %p738
        %s1175 = sand.u32 %s728, 1
        %s1176 = scalar_lea.sflag [#allocation4], %s1175
        %s1177 = sand.u32 %s728, 1
        %s1178 = smul.addr %s1177, 16
        %s1179 = scalar_lea.vmem [#allocation26], %s1178
        %v1181 = vld [vmem:[%s1032] sm:$0xff]
        %v1182 = vld [vmem:[%s1032 + $0x8] sm:$0xff]
        %v1183 = vld [vmem:[#allocation5] sm:$0x1]
        %v1184 = vld [vmem:[%s5] sm:$0x1]
        %v1185 = vld [vmem:[#allocation7] sm:$0xf]
        %v1186 = vld [vmem:[#allocation7 + $0x4] sm:$0xf]
        %v1187 = vld [vmem:[#allocation7 + $0x8] sm:$0xf]
        %v1188 = vld [vmem:[#allocation7 + $0xc] sm:$0xf]
        %v1189 = vld [vmem:[#allocation7 + $0x10] sm:$0xf]
        %v1190 = vld [vmem:[#allocation7 + $0x14] sm:$0xf]
        %v1191 = vld [vmem:[#allocation7 + $0x18] sm:$0xf]
        %v1192 = vld [vmem:[#allocation7 + $0x1c] sm:$0xf]
        %v1193 = vld [vmem:[#allocation7 + $0x20] sm:$0xf]
        %v1194 = vld [vmem:[#allocation7 + $0x24] sm:$0xf]
        %v1195 = vld [vmem:[#allocation7 + $0x28] sm:$0xf]
        %v1196 = vld [vmem:[#allocation7 + $0x2c] sm:$0xf]
        %v1197 = vld [vmem:[#allocation7 + $0x30] sm:$0xf]
        %v1198 = vld [vmem:[#allocation7 + $0x34] sm:$0xf]
        %v1199 = vld [vmem:[#allocation7 + $0x38] sm:$0xf]
        %v1200 = vld [vmem:[#allocation7 + $0x3c] sm:$0xf]
        %v1201 = vld [vmem:[%s9] sm:$0x1]
        %v1202 = vld [vmem:[#allocation8] sm:$0xf]
        %v1203 = vld [vmem:[#allocation8 + $0x4] sm:$0xf]
        %v1204 = vld [vmem:[#allocation8 + $0x8] sm:$0xf]
        %v1205 = vld [vmem:[#allocation8 + $0xc] sm:$0xf]
        %v1206 = vld [vmem:[#allocation8 + $0x10] sm:$0xf]
        %v1207 = vld [vmem:[#allocation8 + $0x14] sm:$0xf]
        %v1208 = vld [vmem:[#allocation8 + $0x18] sm:$0xf]
        %v1209 = vld [vmem:[#allocation8 + $0x1c] sm:$0xf]
        %v1210 = vld [vmem:[#allocation8 + $0x20] sm:$0xf]
        %v1211 = vld [vmem:[#allocation8 + $0x24] sm:$0xf]
        %v1212 = vld [vmem:[#allocation8 + $0x28] sm:$0xf]
        %v1213 = vld [vmem:[#allocation8 + $0x2c] sm:$0xf]
        %v1214 = vld [vmem:[#allocation8 + $0x30] sm:$0xf]
        %v1215 = vld [vmem:[#allocation8 + $0x34] sm:$0xf]
        %v1216 = vld [vmem:[#allocation8 + $0x38] sm:$0xf]
        %v1217 = vld [vmem:[#allocation8 + $0x3c] sm:$0xf]
        %v1218 = vld [vmem:[%s13] sm:$0x1]
        %v1219 = vld [vmem:[#allocation10] sm:$0xf]
        %v1220 = vld [vmem:[#allocation10 + $0x4] sm:$0xf]
        %v1221 = vld [vmem:[#allocation10 + $0x8] sm:$0xf]
        %v1222 = vld [vmem:[#allocation10 + $0xc] sm:$0xf]
        %v1223 = vld [vmem:[#allocation10 + $0x10] sm:$0xf]
        %v1224 = vld [vmem:[#allocation10 + $0x14] sm:$0xf]
        %v1225 = vld [vmem:[#allocation10 + $0x18] sm:$0xf]
        %v1226 = vld [vmem:[#allocation10 + $0x1c] sm:$0xf]
        %v1227 = vld [vmem:[#allocation10 + $0x20] sm:$0xf]
        %v1228 = vld [vmem:[#allocation10 + $0x24] sm:$0xf]
        %v1229 = vld [vmem:[#allocation10 + $0x28] sm:$0xf]
        %v1230 = vld [vmem:[#allocation10 + $0x2c] sm:$0xf]
        %v1231 = vld [vmem:[#allocation10 + $0x30] sm:$0xf]
        %v1232 = vld [vmem:[#allocation10 + $0x34] sm:$0xf]
        %v1233 = vld [vmem:[#allocation10 + $0x38] sm:$0xf]
        %v1234 = vld [vmem:[#allocation10 + $0x3c] sm:$0xf]
        %v1235 = vld [vmem:[%s17] sm:$0x1]
        %1236 = vadd.xlane.f32.xlu0 %v1181
        %v1237 = vpop.xlane.xlu0 %1236
        %1238 = vadd.xlane.f32.xlu0 %v1182
        %v1239 = vpop.xlane.xlu0 %1238
        %v1240 = vmul.f32 %v1237, 0.03125
        %v1241 = vmul.f32 %v1239, 0.03125
        %v1242 = vmul.f32 %v1181, %v1181
        %v1243 = vmul.f32 %v1182, %v1182
        %1244 = vadd.xlane.f32.xlu0 %v1242
        %v1245 = vpop.xlane.xlu0 %1244
        %1246 = vadd.xlane.f32.xlu0 %v1243
        %v1247 = vpop.xlane.xlu0 %1246
        %v1248 = vmul.f32 %v1245, 0.03125
        %v1249 = vmul.f32 %v1247, 0.03125
        %v1250 = vmul.f32 %v1240, %v1240
        %v1251 = vmul.f32 %v1241, %v1241
        %v1252 = vsub.f32 %v1248, %v1250
        %v1253 = vsub.f32 %v1249, %v1251
        %v1254 = vsub.f32 %v1181, %v1240
        %v1255 = vsub.f32 %v1182, %v1241
        %v1256 = vadd.f32 %v1252, 1e-05
        %v1257 = vadd.f32 %v1253, 1e-05
        %v1258 = vrsqrt.pop %v1256
        %v1259 = vmul.f32 %v1258, %v1256
        %v1260 = vmul.f32 %v1259, %v1258
        %v1261 = vmul.f32 0.5, %v1260
        %v1262 = vsub.f32 1.5, %v1261
        %v1263 = vmul.f32 %v1258, %v1262
        %vm1264 = vweird.f32 %v1256
        %vm1265 = vweird.f32 %v1258
        %vm1266 = vmor %vm1264, %vm1265
        %v1267 = vsel %vm1266, %v1258, %v1263
        %v1268 = vrsqrt.pop %v1257
        %v1269 = vmul.f32 %v1268, %v1257
        %v1270 = vmul.f32 %v1269, %v1268
        %v1271 = vmul.f32 0.5, %v1270
        %v1272 = vsub.f32 1.5, %v1271
        %v1273 = vmul.f32 %v1268, %v1272
        %vm1274 = vweird.f32 %v1257
        %vm1275 = vweird.f32 %v1268
        %vm1276 = vmor %vm1274, %vm1275
        %v1277 = vsel %vm1276, %v1268, %v1273
        %v1278 = vmul.f32 %v1254, %v1267
        %v1279 = vmul.f32 %v1255, %v1277
        %v1281 = vperm.slane %v1183, 0
        %v1283 = vmul.f32 %v1278, %v1281
        %v1284 = vmul.f32 %v1279, %v1281
        %v1286 = vperm.slane %v1184, 0
        %v1288 = vadd.f32 %v1283, %v1286
        %v1289 = vadd.f32 %v1284, %v1286
        %v1290 = vpack.c.bf16 %v1289, %v1288
        %v1292 = vperm.slane %v1201, 0
        %v1310 = vunpack.c.l.b16 %v1185
        %v1311 = vunpack.c.l.b16 %v1186
        %v1312 = vunpack.c.l.b16 %v1187
        %v1313 = vunpack.c.l.b16 %v1188
        %v1314 = vunpack.c.l.b16 %v1189
        %v1315 = vunpack.c.l.b16 %v1190
        %v1316 = vunpack.c.l.b16 %v1191
        %v1317 = vunpack.c.l.b16 %v1192
        %v1318 = vunpack.c.l.b16 %v1193
        %v1319 = vunpack.c.l.b16 %v1194
        %v1320 = vunpack.c.l.b16 %v1195
        %v1321 = vunpack.c.l.b16 %v1196
        %v1322 = vunpack.c.l.b16 %v1197
        %v1323 = vunpack.c.l.b16 %v1198
        %v1324 = vunpack.c.l.b16 %v1199
        %v1325 = vunpack.c.l.b16 %v1200
        %v1326 = vpack.c.b16 %v1311, %v1310
        %v1327 = vpack.c.b16 %v1313, %v1312
        %v1328 = vpack.c.b16 %v1315, %v1314
        %v1329 = vpack.c.b16 %v1317, %v1316
        %v1330 = vpack.c.b16 %v1319, %v1318
        %v1331 = vpack.c.b16 %v1321, %v1320
        %v1332 = vpack.c.b16 %v1323, %v1322
        %v1333 = vpack.c.b16 %v1325, %v1324
        %1342 = vmatpush.bf16.msra.mxu0 %v1333
        %1343 = vmatpush.bf16.msra.mxu0 %v1332
        %1344 = vmatpush.bf16.msra.mxu0 %v1331
        %1345 = vmatpush.bf16.msra.mxu0 %v1330
        %1346 = vmatpush.bf16.msra.mxu0 %v1329
        %1347 = vmatpush.bf16.msra.mxu0 %v1328
        %1348 = vmatpush.bf16.msra.mxu0 %v1327
        %1349 = vmatpush.bf16.msra.mxu0 %v1326
        %1350 = vmatmul.bf16.gmra.mxu0 %v1290
        %v1351 = vpop.f32.mrf.mxu0
        %v1352 = vadd.f32 %v1292, %v1351
        %v1353 = vpop.f32.mrf.mxu0
        %v1354 = vadd.f32 %v1292, %v1353
        %1355 = vdwg.mxu0
        %v1356 = vpack.c.bf16 %v1354, %v1352
        %v1358 = vperm.slane %v1218, 0
        %v1376 = vunpack.c.l.b16 %v1202
        %v1377 = vunpack.c.l.b16 %v1203
        %v1378 = vunpack.c.l.b16 %v1204
        %v1379 = vunpack.c.l.b16 %v1205
        %v1380 = vunpack.c.l.b16 %v1206
        %v1381 = vunpack.c.l.b16 %v1207
        %v1382 = vunpack.c.l.b16 %v1208
        %v1383 = vunpack.c.l.b16 %v1209
        %v1384 = vunpack.c.l.b16 %v1210
        %v1385 = vunpack.c.l.b16 %v1211
        %v1386 = vunpack.c.l.b16 %v1212
        %v1387 = vunpack.c.l.b16 %v1213
        %v1388 = vunpack.c.l.b16 %v1214
        %v1389 = vunpack.c.l.b16 %v1215
        %v1390 = vunpack.c.l.b16 %v1216
        %v1391 = vunpack.c.l.b16 %v1217
        %v1392 = vpack.c.b16 %v1377, %v1376
        %v1393 = vpack.c.b16 %v1379, %v1378
        %v1394 = vpack.c.b16 %v1381, %v1380
        %v1395 = vpack.c.b16 %v1383, %v1382
        %v1396 = vpack.c.b16 %v1385, %v1384
        %v1397 = vpack.c.b16 %v1387, %v1386
        %v1398 = vpack.c.b16 %v1389, %v1388
        %v1399 = vpack.c.b16 %v1391, %v1390
        %1408 = vmatpush.bf16.msra.mxu0 %v1399
        %1409 = vmatpush.bf16.msra.mxu0 %v1398
        %1410 = vmatpush.bf16.msra.mxu0 %v1397
        %1411 = vmatpush.bf16.msra.mxu0 %v1396
        %1412 = vmatpush.bf16.msra.mxu0 %v1395
        %1413 = vmatpush.bf16.msra.mxu0 %v1394
        %1414 = vmatpush.bf16.msra.mxu0 %v1393
        %1415 = vmatpush.bf16.msra.mxu0 %v1392
        %1416 = vmatmul.bf16.gmra.mxu0 %v1356
        %v1417 = vpop.f32.mrf.mxu0
        %v1418 = vadd.f32 %v1358, %v1417
        %v1419 = vpop.f32.mrf.mxu0
        %v1420 = vadd.f32 %v1358, %v1419
        %1421 = vdwg.mxu0
        %v1422 = vmax.f32 %v1418, 0.0
        %v1423 = vmax.f32 %v1420, 0.0
        %v1424 = vpack.c.bf16 %v1423, %v1422
        %v1426 = vperm.slane %v1235, 0
        %v1444 = vunpack.c.l.b16 %v1219
        %v1445 = vunpack.c.l.b16 %v1220
        %v1446 = vunpack.c.l.b16 %v1221
        %v1447 = vunpack.c.l.b16 %v1222
        %v1448 = vunpack.c.l.b16 %v1223
        %v1449 = vunpack.c.l.b16 %v1224
        %v1450 = vunpack.c.l.b16 %v1225
        %v1451 = vunpack.c.l.b16 %v1226
        %v1452 = vunpack.c.l.b16 %v1227
        %v1453 = vunpack.c.l.b16 %v1228
        %v1454 = vunpack.c.l.b16 %v1229
        %v1455 = vunpack.c.l.b16 %v1230
        %v1456 = vunpack.c.l.b16 %v1231
        %v1457 = vunpack.c.l.b16 %v1232
        %v1458 = vunpack.c.l.b16 %v1233
        %v1459 = vunpack.c.l.b16 %v1234
        %v1460 = vpack.c.b16 %v1445, %v1444
        %v1461 = vpack.c.b16 %v1447, %v1446
        %v1462 = vpack.c.b16 %v1449, %v1448
        %v1463 = vpack.c.b16 %v1451, %v1450
        %v1464 = vpack.c.b16 %v1453, %v1452
        %v1465 = vpack.c.b16 %v1455, %v1454
        %v1466 = vpack.c.b16 %v1457, %v1456
        %v1467 = vpack.c.b16 %v1459, %v1458
        %1476 = vmatpush.bf16.msra.mxu0 %v1467
        %1477 = vmatpush.bf16.msra.mxu0 %v1466
        %1478 = vmatpush.bf16.msra.mxu0 %v1465
        %1479 = vmatpush.bf16.msra.mxu0 %v1464
        %1480 = vmatpush.bf16.msra.mxu0 %v1463
        %1481 = vmatpush.bf16.msra.mxu0 %v1462
        %1482 = vmatpush.bf16.msra.mxu0 %v1461
        %1483 = vmatpush.bf16.msra.mxu0 %v1460
        %1484 = vmatmul.bf16.gmra.mxu0 %v1424
        %v1485 = vpop.f32.mrf.mxu0
        %v1486 = vadd.f32 %v1426, %v1485
        %v1487 = vpop.f32.mrf.mxu0
        %v1488 = vadd.f32 %v1426, %v1487
        %1489 = vdwg.mxu0
        %v1490 = vadd.f32 %v1486, %v1352
        %v1491 = vadd.f32 %v1488, %v1354
        %v1492 = vld [vmem:[%s19] sm:$0x1]
        %v1493 = vld [vmem:[%s21] sm:$0x1]
        %1494 = vadd.xlane.f32.xlu0 %v1490
        %v1495 = vpop.xlane.xlu0 %1494
        %1496 = vadd.xlane.f32.xlu0 %v1491
        %v1497 = vpop.xlane.xlu0 %1496
        %v1498 = vmul.f32 %v1495, 0.015625
        %v1499 = vmul.f32 %v1497, 0.015625
        %v1500 = vmul.f32 %v1490, %v1490
        %v1501 = vmul.f32 %v1491, %v1491
        %1502 = vadd.xlane.f32.xlu0 %v1500
        %v1503 = vpop.xlane.xlu0 %1502
        %1504 = vadd.xlane.f32.xlu0 %v1501
        %v1505 = vpop.xlane.xlu0 %1504
        %v1506 = vmul.f32 %v1503, 0.015625
        %v1507 = vmul.f32 %v1505, 0.015625
        %v1508 = vmul.f32 %v1498, %v1498
        %v1509 = vmul.f32 %v1499, %v1499
        %v1510 = vsub.f32 %v1506, %v1508
        %v1511 = vsub.f32 %v1507, %v1509
        %v1512 = vsub.f32 %v1490, %v1498
        %v1513 = vsub.f32 %v1491, %v1499
        %v1514 = vadd.f32 %v1510, 1e-05
        %v1515 = vadd.f32 %v1511, 1e-05
        %v1516 = vrsqrt.pop %v1514
        %v1517 = vmul.f32 %v1516, %v1514
        %v1518 = vmul.f32 %v1517, %v1516
        %v1519 = vmul.f32 0.5, %v1518
        %v1520 = vsub.f32 1.5, %v1519
        %v1521 = vmul.f32 %v1516, %v1520
        %vm1522 = vweird.f32 %v1514
        %vm1523 = vweird.f32 %v1516
        %vm1524 = vmor %vm1522, %vm1523
        %v1525 = vsel %vm1524, %v1516, %v1521
        %v1526 = vrsqrt.pop %v1515
        %v1527 = vmul.f32 %v1526, %v1515
        %v1528 = vmul.f32 %v1527, %v1526
        %v1529 = vmul.f32 0.5, %v1528
        %v1530 = vsub.f32 1.5, %v1529
        %v1531 = vmul.f32 %v1526, %v1530
        %vm1532 = vweird.f32 %v1515
        %vm1533 = vweird.f32 %v1526
        %vm1534 = vmor %vm1532, %vm1533
        %v1535 = vsel %vm1534, %v1526, %v1531
        %v1536 = vmul.f32 %v1512, %v1525
        %v1537 = vmul.f32 %v1513, %v1535
        %v1539 = vperm.slane %v1492, 0
        %v1541 = vmul.f32 %v1536, %v1539
        %v1542 = vmul.f32 %v1537, %v1539
        %v1544 = vperm.slane %v1493, 0
        %v1546 = vadd.f32 %v1541, %v1544
        %v1547 = vadd.f32 %v1542, %v1544
        %v1548 = vpack.c.bf16 %v1547, %v1546
        %v1549 = vld [vmem:[#allocation11] sm:$0xf]
        %v1550 = vld [vmem:[#allocation11 + $0x4] sm:$0xf]
        %v1551 = vld [vmem:[#allocation11 + $0x8] sm:$0xf]
        %v1552 = vld [vmem:[#allocation11 + $0xc] sm:$0xf]
        %v1553 = vld [vmem:[#allocation11 + $0x10] sm:$0xf]
        %v1554 = vld [vmem:[#allocation11 + $0x14] sm:$0xf]
        %v1555 = vld [vmem:[#allocation11 + $0x18] sm:$0xf]
        %v1556 = vld [vmem:[#allocation11 + $0x1c] sm:$0xf]
        %v1557 = vld [vmem:[#allocation11 + $0x20] sm:$0xf]
        %v1558 = vld [vmem:[#allocation11 + $0x24] sm:$0xf]
        %v1559 = vld [vmem:[#allocation11 + $0x28] sm:$0xf]
        %v1560 = vld [vmem:[#allocation11 + $0x2c] sm:$0xf]
        %v1561 = vld [vmem:[#allocation11 + $0x30] sm:$0xf]
        %v1562 = vld [vmem:[#allocation11 + $0x34] sm:$0xf]
        %v1563 = vld [vmem:[#allocation11 + $0x38] sm:$0xf]
        %v1564 = vld [vmem:[#allocation11 + $0x3c] sm:$0xf]
        %v1581 = vunpack.c.l.b16 %v1549
        %v1582 = vunpack.c.l.b16 %v1550
        %v1583 = vunpack.c.l.b16 %v1551
        %v1584 = vunpack.c.l.b16 %v1552
        %v1585 = vunpack.c.l.b16 %v1553
        %v1586 = vunpack.c.l.b16 %v1554
        %v1587 = vunpack.c.l.b16 %v1555
        %v1588 = vunpack.c.l.b16 %v1556
        %v1589 = vunpack.c.l.b16 %v1557
        %v1590 = vunpack.c.l.b16 %v1558
        %v1591 = vunpack.c.l.b16 %v1559
        %v1592 = vunpack.c.l.b16 %v1560
        %v1593 = vunpack.c.l.b16 %v1561
        %v1594 = vunpack.c.l.b16 %v1562
        %v1595 = vunpack.c.l.b16 %v1563
        %v1596 = vunpack.c.l.b16 %v1564
        %v1597 = vpack.c.b16 %v1582, %v1581
        %v1598 = vpack.c.b16 %v1584, %v1583
        %v1599 = vpack.c.b16 %v1586, %v1585
        %v1600 = vpack.c.b16 %v1588, %v1587
        %v1601 = vpack.c.b16 %v1590, %v1589
        %v1602 = vpack.c.b16 %v1592, %v1591
        %v1603 = vpack.c.b16 %v1594, %v1593
        %v1604 = vpack.c.b16 %v1596, %v1595
        %1613 = vmatpush.bf16.msra.mxu0 %v1604
        %1614 = vmatpush.bf16.msra.mxu0 %v1603
        %1615 = vmatpush.bf16.msra.mxu0 %v1602
        %1616 = vmatpush.bf16.msra.mxu0 %v1601
        %1617 = vmatpush.bf16.msra.mxu0 %v1600
        %1618 = vmatpush.bf16.msra.mxu0 %v1599
        %1619 = vmatpush.bf16.msra.mxu0 %v1598
        %1620 = vmatpush.bf16.msra.mxu0 %v1597
        %1621 = vmatmul.bf16.gmra.mxu0 %v1548
        %v1622 = vpop.f32.mrf.mxu0
        %v1623 = vadd.f32 0.0, %v1622
        %v1624 = vpop.f32.mrf.mxu0
        %v1625 = vadd.f32 0.0, %v1624
        %1626 = vdwg.mxu0
        %v1627 = vld [vmem:[#allocation13] sm:$0xf]
        %v1628 = vld [vmem:[#allocation13 + $0x4] sm:$0xf]
        %v1629 = vld [vmem:[#allocation13 + $0x8] sm:$0xf]
        %v1630 = vld [vmem:[#allocation13 + $0xc] sm:$0xf]
        %v1631 = vld [vmem:[#allocation13 + $0x10] sm:$0xf]
        %v1632 = vld [vmem:[#allocation13 + $0x14] sm:$0xf]
        %v1633 = vld [vmem:[#allocation13 + $0x18] sm:$0xf]
        %v1634 = vld [vmem:[#allocation13 + $0x1c] sm:$0xf]
        %v1635 = vld [vmem:[#allocation13 + $0x20] sm:$0xf]
        %v1636 = vld [vmem:[#allocation13 + $0x24] sm:$0xf]
        %v1637 = vld [vmem:[#allocation13 + $0x28] sm:$0xf]
        %v1638 = vld [vmem:[#allocation13 + $0x2c] sm:$0xf]
        %v1639 = vld [vmem:[#allocation13 + $0x30] sm:$0xf]
        %v1640 = vld [vmem:[#allocation13 + $0x34] sm:$0xf]
        %v1641 = vld [vmem:[#allocation13 + $0x38] sm:$0xf]
        %v1642 = vld [vmem:[#allocation13 + $0x3c] sm:$0xf]
        %v1659 = vunpack.c.l.b16 %v1627
        %v1660 = vunpack.c.l.b16 %v1628
        %v1661 = vunpack.c.l.b16 %v1629
        %v1662 = vunpack.c.l.b16 %v1630
        %v1663 = vunpack.c.l.b16 %v1631
        %v1664 = vunpack.c.l.b16 %v1632
        %v1665 = vunpack.c.l.b16 %v1633
        %v1666 = vunpack.c.l.b16 %v1634
        %v1667 = vunpack.c.l.b16 %v1635
        %v1668 = vunpack.c.l.b16 %v1636
        %v1669 = vunpack.c.l.b16 %v1637
        %v1670 = vunpack.c.l.b16 %v1638
        %v1671 = vunpack.c.l.b16 %v1639
        %v1672 = vunpack.c.l.b16 %v1640
        %v1673 = vunpack.c.l.b16 %v1641
        %v1674 = vunpack.c.l.b16 %v1642
        %v1675 = vpack.c.b16 %v1660, %v1659
        %v1676 = vpack.c.b16 %v1662, %v1661
        %v1677 = vpack.c.b16 %v1664, %v1663
        %v1678 = vpack.c.b16 %v1666, %v1665
        %v1679 = vpack.c.b16 %v1668, %v1667
        %v1680 = vpack.c.b16 %v1670, %v1669
        %v1681 = vpack.c.b16 %v1672, %v1671
        %v1682 = vpack.c.b16 %v1674, %v1673
        %1691 = vmatpush.bf16.msra.mxu0 %v1682
        %1692 = vmatpush.bf16.msra.mxu0 %v1681
        %1693 = vmatpush.bf16.msra.mxu0 %v1680
        %1694 = vmatpush.bf16.msra.mxu0 %v1679
        %1695 = vmatpush.bf16.msra.mxu0 %v1678
        %1696 = vmatpush.bf16.msra.mxu0 %v1677
        %1697 = vmatpush.bf16.msra.mxu0 %v1676
        %1698 = vmatpush.bf16.msra.mxu0 %v1675
        %1699 = vmatmul.bf16.gmra.mxu0 %v1548
        %v1700 = vpop.f32.mrf.mxu0
        %v1701 = vadd.f32 0.0, %v1700
        %v1702 = vpop.f32.mrf.mxu0
        %v1703 = vadd.f32 0.0, %v1702
        %1704 = vdwg.mxu0
        %v1705 = vld [vmem:[#allocation14] sm:$0xf]
        %v1706 = vld [vmem:[#allocation14 + $0x4] sm:$0xf]
        %v1707 = vld [vmem:[#allocation14 + $0x8] sm:$0xf]
        %v1708 = vld [vmem:[#allocation14 + $0xc] sm:$0xf]
        %v1709 = vld [vmem:[#allocation14 + $0x10] sm:$0xf]
        %v1710 = vld [vmem:[#allocation14 + $0x14] sm:$0xf]
        %v1711 = vld [vmem:[#allocation14 + $0x18] sm:$0xf]
        %v1712 = vld [vmem:[#allocation14 + $0x1c] sm:$0xf]
        %v1713 = vld [vmem:[#allocation14 + $0x20] sm:$0xf]
        %v1714 = vld [vmem:[#allocation14 + $0x24] sm:$0xf]
        %v1715 = vld [vmem:[#allocation14 + $0x28] sm:$0xf]
        %v1716 = vld [vmem:[#allocation14 + $0x2c] sm:$0xf]
        %v1717 = vld [vmem:[#allocation14 + $0x30] sm:$0xf]
        %v1718 = vld [vmem:[#allocation14 + $0x34] sm:$0xf]
        %v1719 = vld [vmem:[#allocation14 + $0x38] sm:$0xf]
        %v1720 = vld [vmem:[#allocation14 + $0x3c] sm:$0xf]
        %v1737 = vunpack.c.l.b16 %v1705
        %v1738 = vunpack.c.l.b16 %v1706
        %v1739 = vunpack.c.l.b16 %v1707
        %v1740 = vunpack.c.l.b16 %v1708
        %v1741 = vunpack.c.l.b16 %v1709
        %v1742 = vunpack.c.l.b16 %v1710
        %v1743 = vunpack.c.l.b16 %v1711
        %v1744 = vunpack.c.l.b16 %v1712
        %v1745 = vunpack.c.l.b16 %v1713
        %v1746 = vunpack.c.l.b16 %v1714
        %v1747 = vunpack.c.l.b16 %v1715
        %v1748 = vunpack.c.l.b16 %v1716
        %v1749 = vunpack.c.l.b16 %v1717
        %v1750 = vunpack.c.l.b16 %v1718
        %v1751 = vunpack.c.l.b16 %v1719
        %v1752 = vunpack.c.l.b16 %v1720
        %v1753 = vpack.c.b16 %v1738, %v1737
        %v1754 = vpack.c.b16 %v1740, %v1739
        %v1755 = vpack.c.b16 %v1742, %v1741
        %v1756 = vpack.c.b16 %v1744, %v1743
        %v1757 = vpack.c.b16 %v1746, %v1745
        %v1758 = vpack.c.b16 %v1748, %v1747
        %v1759 = vpack.c.b16 %v1750, %v1749
        %v1760 = vpack.c.b16 %v1752, %v1751
        %1769 = vmatpush.bf16.msra.mxu0 %v1760
        %1770 = vmatpush.bf16.msra.mxu0 %v1759
        %1771 = vmatpush.bf16.msra.mxu0 %v1758
        %1772 = vmatpush.bf16.msra.mxu0 %v1757
        %1773 = vmatpush.bf16.msra.mxu0 %v1756
        %1774 = vmatpush.bf16.msra.mxu0 %v1755
        %1775 = vmatpush.bf16.msra.mxu0 %v1754
        %1776 = vmatpush.bf16.msra.mxu0 %v1753
        %1777 = vmatmul.bf16.gmra.mxu0 %v1548
        %v1778 = vpop.f32.mrf.mxu0
        %v1779 = vadd.f32 0.0, %v1778
        %v1780 = vpop.f32.mrf.mxu0
        %v1781 = vadd.f32 0.0, %v1780
        %1782 = vdwg.mxu0
        %v1783 = vpack.c.bf16 %v1625, %v1623
        %v1784 = vpack.c.bf16 %v1703, %v1701
        %1785 = vmatpush.bf16.xpose.msra.mxu0 0
        %1786 = vmatpush.bf16.xpose.msra.mxu0 0
        %1787 = vmatpush.bf16.xpose.msra.mxu0 0
        %1788 = vmatpush.bf16.xpose.msra.mxu0 0
        %1789 = vmatpush.bf16.xpose.msra.mxu0 0
        %1790 = vmatpush.bf16.xpose.msra.mxu0 0
        %1791 = vmatpush.bf16.xpose.msra.mxu0 0
        %1792 = vmatpush.bf16.xpose.msra.mxu0 %v1784
        %1793 = vmatmul.bf16.gmra.mxu0 %v1783
        %v1794 = vpop.f32.mrf.mxu0
        %v1795 = vadd.f32 0.0, %v1794
        %v1796 = vpop.f32.mrf.mxu0
        %v1797 = vadd.f32 0.0, %v1796
        %1798 = vdwg.mxu0
        %v1799 = vmul.f32 %v1795, 0.125
        %v1800 = vmul.f32 %v1797, 0.125
        %v1801 = vlaneseq
        %v1802 = vshrl.u32 %v1801, 7
        %v1803 = vadd.s32 %v1802, 8
        %v1804 = vlaneseq
        %v1805 = vand.u32 %v1804, 127
        %vm1806 = vcmp.ge.s32.totalorder %v1802, %v1805
        %vm1807 = vcmp.ge.s32.totalorder %v1803, %v1805
        %v1808 = vsel %vm1806, %v1799, -1e+30
        %v1809 = vsel %vm1807, %v1800, -1e+30
        %vm1810 = vcmask 130048
        %v1811 = vsel %vm1810, %v1808, -inf
        %1812 = vmax.xlane.f32.xlu0 %v1811
        %v1813 = vpop.xlane.xlu0 %1812
        %v1814 = vsel %vm1810, %v1809, -inf
        %1815 = vmax.xlane.f32.xlu0 %v1814
        %v1816 = vpop.xlane.xlu0 %1815
        %v1817 = vsub.f32 %v1808, %v1813
        %v1818 = vsub.f32 %v1809, %v1816
        %v1819 = vmul.f32 %v1817, 1.442695
        %v1820 = vpow.pop %v1819
        %v1821 = vmul.f32 %v1818, 1.442695
        %v1822 = vpow.pop %v1821
        %v1823 = vsel %vm1810, %v1820, 0.0
        %1824 = vadd.xlane.f32.xlu0 %v1823
        %v1825 = vpop.xlane.xlu0 %1824
        %v1826 = vsel %vm1810, %v1822, 0.0
        %1827 = vadd.xlane.f32.xlu0 %v1826
        %v1828 = vpop.xlane.xlu0 %1827
        %v1829 = vrcp.pop %v1825
        %v1830 = vrcp.pop %v1828
        %v1831 = vmul.f32 %v1820, %v1829
        %v1832 = vmul.f32 %v1822, %v1830
        %v1833 = vpack.c.bf16 %v1832, %v1831
        %v1834 = vpack.c.bf16 %v1781, %v1779
        %v1836 = vsel %vm1810, %v1833, 0
        %1838 = vmatpush.bf16.msra.mxu0 0
        %1839 = vmatpush.bf16.msra.mxu0 0
        %1840 = vmatpush.bf16.msra.mxu0 0
        %1841 = vmatpush.bf16.msra.mxu0 0
        %1842 = vmatpush.bf16.msra.mxu0 0
        %1843 = vmatpush.bf16.msra.mxu0 0
        %1844 = vmatpush.bf16.msra.mxu0 0
        %1845 = vmatpush.bf16.msra.mxu0 %v1834
        %1846 = vmatmul.bf16.gmra.mxu0 %v1836
        %v1847 = vpop.f32.mrf.mxu0
        %v1848 = vadd.f32 0.0, %v1847
        %v1849 = vpop.f32.mrf.mxu0
        %v1850 = vadd.f32 0.0, %v1849
        %1851 = vdwg.mxu0
        %v1852 = vpack.c.bf16 %v1850, %v1848
        %v1853 = vld [vmem:[#allocation16] sm:$0xf]
        %v1854 = vld [vmem:[#allocation16 + $0x4] sm:$0xf]
        %v1855 = vld [vmem:[#allocation16 + $0x8] sm:$0xf]
        %v1856 = vld [vmem:[#allocation16 + $0xc] sm:$0xf]
        %v1857 = vld [vmem:[#allocation16 + $0x10] sm:$0xf]
        %v1858 = vld [vmem:[#allocation16 + $0x14] sm:$0xf]
        %v1859 = vld [vmem:[#allocation16 + $0x18] sm:$0xf]
        %v1860 = vld [vmem:[#allocation16 + $0x1c] sm:$0xf]
        %v1861 = vld [vmem:[#allocation16 + $0x20] sm:$0xf]
        %v1862 = vld [vmem:[#allocation16 + $0x24] sm:$0xf]
        %v1863 = vld [vmem:[#allocation16 + $0x28] sm:$0xf]
        %v1864 = vld [vmem:[#allocation16 + $0x2c] sm:$0xf]
        %v1865 = vld [vmem:[#allocation16 + $0x30] sm:$0xf]
        %v1866 = vld [vmem:[#allocation16 + $0x34] sm:$0xf]
        %v1867 = vld [vmem:[#allocation16 + $0x38] sm:$0xf]
        %v1868 = vld [vmem:[#allocation16 + $0x3c] sm:$0xf]
        %v1885 = vunpack.c.l.b16 %v1853
        %v1886 = vunpack.c.l.b16 %v1854
        %v1887 = vunpack.c.l.b16 %v1855
        %v1888 = vunpack.c.l.b16 %v1856
        %v1889 = vunpack.c.l.b16 %v1857
        %v1890 = vunpack.c.l.b16 %v1858
        %v1891 = vunpack.c.l.b16 %v1859
        %v1892 = vunpack.c.l.b16 %v1860
        %v1893 = vunpack.c.l.b16 %v1861
        %v1894 = vunpack.c.l.b16 %v1862
        %v1895 = vunpack.c.l.b16 %v1863
        %v1896 = vunpack.c.l.b16 %v1864
        %v1897 = vunpack.c.l.b16 %v1865
        %v1898 = vunpack.c.l.b16 %v1866
        %v1899 = vunpack.c.l.b16 %v1867
        %v1900 = vunpack.c.l.b16 %v1868
        %v1901 = vpack.c.b16 %v1886, %v1885
        %v1902 = vpack.c.b16 %v1888, %v1887
        %v1903 = vpack.c.b16 %v1890, %v1889
        %v1904 = vpack.c.b16 %v1892, %v1891
        %v1905 = vpack.c.b16 %v1894, %v1893
        %v1906 = vpack.c.b16 %v1896, %v1895
        %v1907 = vpack.c.b16 %v1898, %v1897
        %v1908 = vpack.c.b16 %v1900, %v1899
        %1917 = vmatpush.bf16.msra.mxu0 %v1908
        %1918 = vmatpush.bf16.msra.mxu0 %v1907
        %1919 = vmatpush.bf16.msra.mxu0 %v1906
        %1920 = vmatpush.bf16.msra.mxu0 %v1905
        %1921 = vmatpush.bf16.msra.mxu0 %v1904
        %1922 = vmatpush.bf16.msra.mxu0 %v1903
        %1923 = vmatpush.bf16.msra.mxu0 %v1902
        %1924 = vmatpush.bf16.msra.mxu0 %v1901
        %1925 = vmatmul.bf16.gmra.mxu0 %v1852
        %v1926 = vpop.f32.mrf.mxu0
        %v1927 = vadd.f32 0.0, %v1926
        %v1928 = vpop.f32.mrf.mxu0
        %v1929 = vadd.f32 0.0, %v1928
        %1930 = vdwg.mxu0
        %v1931 = vadd.f32 %v1490, %v1927
        %v1932 = vadd.f32 %v1491, %v1929
        %v1933 = vld [vmem:[%s31] sm:$0x1]
        %v1934 = vld [vmem:[%s33] sm:$0x1]
        %1935 = vadd.xlane.f32.xlu0 %v1931
        %v1936 = vpop.xlane.xlu0 %1935
        %1937 = vadd.xlane.f32.xlu0 %v1932
        %v1938 = vpop.xlane.xlu0 %1937
        %v1939 = vmul.f32 %v1936, 0.015625
        %v1940 = vmul.f32 %v1938, 0.015625
        %v1941 = vmul.f32 %v1931, %v1931
        %v1942 = vmul.f32 %v1932, %v1932
        %1943 = vadd.xlane.f32.xlu0 %v1941
        %v1944 = vpop.xlane.xlu0 %1943
        %1945 = vadd.xlane.f32.xlu0 %v1942
        %v1946 = vpop.xlane.xlu0 %1945
        %v1947 = vmul.f32 %v1944, 0.015625
        %v1948 = vmul.f32 %v1946, 0.015625
        %v1949 = vmul.f32 %v1939, %v1939
        %v1950 = vmul.f32 %v1940, %v1940
        %v1951 = vsub.f32 %v1947, %v1949
        %v1952 = vsub.f32 %v1948, %v1950
        %v1953 = vsub.f32 %v1931, %v1939
        %v1954 = vsub.f32 %v1932, %v1940
        %v1955 = vadd.f32 %v1951, 1e-05
        %v1956 = vadd.f32 %v1952, 1e-05
        %v1957 = vrsqrt.pop %v1955
        %v1958 = vmul.f32 %v1957, %v1955
        %v1959 = vmul.f32 %v1958, %v1957
        %v1960 = vmul.f32 0.5, %v1959
        %v1961 = vsub.f32 1.5, %v1960
        %v1962 = vmul.f32 %v1957, %v1961
        %vm1963 = vweird.f32 %v1955
        %vm1964 = vweird.f32 %v1957
        %vm1965 = vmor %vm1963, %vm1964
        %v1966 = vsel %vm1965, %v1957, %v1962
        %v1967 = vrsqrt.pop %v1956
        %v1968 = vmul.f32 %v1967, %v1956
        %v1969 = vmul.f32 %v1968, %v1967
        %v1970 = vmul.f32 0.5, %v1969
        %v1971 = vsub.f32 1.5, %v1970
        %v1972 = vmul.f32 %v1967, %v1971
        %vm1973 = vweird.f32 %v1956
        %vm1974 = vweird.f32 %v1967
        %vm1975 = vmor %vm1973, %vm1974
        %v1976 = vsel %vm1975, %v1967, %v1972
        %v1977 = vmul.f32 %v1953, %v1966
        %v1978 = vmul.f32 %v1954, %v1976
        %v1980 = vperm.slane %v1933, 0
        %v1982 = vmul.f32 %v1977, %v1980
        %v1983 = vmul.f32 %v1978, %v1980
        %v1985 = vperm.slane %v1934, 0
        %v1987 = vadd.f32 %v1982, %v1985
        %v1988 = vadd.f32 %v1983, %v1985
        %v1989 = vpack.c.bf16 %v1988, %v1987
        %v1990 = vld [vmem:[#allocation17] sm:$0xf]
        %v1991 = vld [vmem:[#allocation17 + $0x4] sm:$0xf]
        %v1992 = vld [vmem:[#allocation17 + $0x8] sm:$0xf]
        %v1993 = vld [vmem:[#allocation17 + $0xc] sm:$0xf]
        %v1994 = vld [vmem:[#allocation17 + $0x10] sm:$0xf]
        %v1995 = vld [vmem:[#allocation17 + $0x14] sm:$0xf]
        %v1996 = vld [vmem:[#allocation17 + $0x18] sm:$0xf]
        %v1997 = vld [vmem:[#allocation17 + $0x1c] sm:$0xf]
        %v1998 = vld [vmem:[#allocation17 + $0x20] sm:$0xf]
        %v1999 = vld [vmem:[#allocation17 + $0x24] sm:$0xf]
        %v2000 = vld [vmem:[#allocation17 + $0x28] sm:$0xf]
        %v2001 = vld [vmem:[#allocation17 + $0x2c] sm:$0xf]
        %v2002 = vld [vmem:[#allocation17 + $0x30] sm:$0xf]
        %v2003 = vld [vmem:[#allocation17 + $0x34] sm:$0xf]
        %v2004 = vld [vmem:[#allocation17 + $0x38] sm:$0xf]
        %v2005 = vld [vmem:[#allocation17 + $0x3c] sm:$0xf]
        %v2006 = vld [vmem:[%s37] sm:$0x1]
        %v2008 = vperm.slane %v2006, 0
        %v2026 = vunpack.c.l.b16 %v1990
        %v2027 = vunpack.c.l.b16 %v1991
        %v2028 = vunpack.c.l.b16 %v1992
        %v2029 = vunpack.c.l.b16 %v1993
        %v2030 = vunpack.c.l.b16 %v1994
        %v2031 = vunpack.c.l.b16 %v1995
        %v2032 = vunpack.c.l.b16 %v1996
        %v2033 = vunpack.c.l.b16 %v1997
        %v2034 = vunpack.c.l.b16 %v1998
        %v2035 = vunpack.c.l.b16 %v1999
        %v2036 = vunpack.c.l.b16 %v2000
        %v2037 = vunpack.c.l.b16 %v2001
        %v2038 = vunpack.c.l.b16 %v2002
        %v2039 = vunpack.c.l.b16 %v2003
        %v2040 = vunpack.c.l.b16 %v2004
        %v2041 = vunpack.c.l.b16 %v2005
        %v2042 = vpack.c.b16 %v2027, %v2026
        %v2043 = vpack.c.b16 %v2029, %v2028
        %v2044 = vpack.c.b16 %v2031, %v2030
        %v2045 = vpack.c.b16 %v2033, %v2032
        %v2046 = vpack.c.b16 %v2035, %v2034
        %v2047 = vpack.c.b16 %v2037, %v2036
        %v2048 = vpack.c.b16 %v2039, %v2038
        %v2049 = vpack.c.b16 %v2041, %v2040
        %2058 = vmatpush.bf16.msra.mxu0 %v2049
        %2059 = vmatpush.bf16.msra.mxu0 %v2048
        %2060 = vmatpush.bf16.msra.mxu0 %v2047
        %2061 = vmatpush.bf16.msra.mxu0 %v2046
        %2062 = vmatpush.bf16.msra.mxu0 %v2045
        %2063 = vmatpush.bf16.msra.mxu0 %v2044
        %2064 = vmatpush.bf16.msra.mxu0 %v2043
        %2065 = vmatpush.bf16.msra.mxu0 %v2042
        %2066 = vmatmul.bf16.gmra.mxu0 %v1989
        %v2067 = vpop.f32.mrf.mxu0
        %v2068 = vadd.f32 %v2008, %v2067
        %v2069 = vpop.f32.mrf.mxu0
        %v2070 = vadd.f32 %v2008, %v2069
        %2071 = vdwg.mxu0
        %v2072 = vmax.f32 %v2068, 0.0
        %v2073 = vmax.f32 %v2070, 0.0
        %v2074 = vpack.c.bf16 %v2073, %v2072
        %v2075 = vld [vmem:[#allocation19] sm:$0xf]
        %v2076 = vld [vmem:[#allocation19 + $0x4] sm:$0xf]
        %v2077 = vld [vmem:[#allocation19 + $0x8] sm:$0xf]
        %v2078 = vld [vmem:[#allocation19 + $0xc] sm:$0xf]
        %v2079 = vld [vmem:[#allocation19 + $0x10] sm:$0xf]
        %v2080 = vld [vmem:[#allocation19 + $0x14] sm:$0xf]
        %v2081 = vld [vmem:[#allocation19 + $0x18] sm:$0xf]
        %v2082 = vld [vmem:[#allocation19 + $0x1c] sm:$0xf]
        %v2083 = vld [vmem:[#allocation19 + $0x20] sm:$0xf]
        %v2084 = vld [vmem:[#allocation19 + $0x24] sm:$0xf]
        %v2085 = vld [vmem:[#allocation19 + $0x28] sm:$0xf]
        %v2086 = vld [vmem:[#allocation19 + $0x2c] sm:$0xf]
        %v2087 = vld [vmem:[#allocation19 + $0x30] sm:$0xf]
        %v2088 = vld [vmem:[#allocation19 + $0x34] sm:$0xf]
        %v2089 = vld [vmem:[#allocation19 + $0x38] sm:$0xf]
        %v2090 = vld [vmem:[#allocation19 + $0x3c] sm:$0xf]
        %v2107 = vunpack.c.l.b16 %v2075
        %v2108 = vunpack.c.l.b16 %v2076
        %v2109 = vunpack.c.l.b16 %v2077
        %v2110 = vunpack.c.l.b16 %v2078
        %v2111 = vunpack.c.l.b16 %v2079
        %v2112 = vunpack.c.l.b16 %v2080
        %v2113 = vunpack.c.l.b16 %v2081
        %v2114 = vunpack.c.l.b16 %v2082
        %v2115 = vunpack.c.l.b16 %v2083
        %v2116 = vunpack.c.l.b16 %v2084
        %v2117 = vunpack.c.l.b16 %v2085
        %v2118 = vunpack.c.l.b16 %v2086
        %v2119 = vunpack.c.l.b16 %v2087
        %v2120 = vunpack.c.l.b16 %v2088
        %v2121 = vunpack.c.l.b16 %v2089
        %v2122 = vunpack.c.l.b16 %v2090
        %v2123 = vpack.c.b16 %v2108, %v2107
        %v2124 = vpack.c.b16 %v2110, %v2109
        %v2125 = vpack.c.b16 %v2112, %v2111
        %v2126 = vpack.c.b16 %v2114, %v2113
        %v2127 = vpack.c.b16 %v2116, %v2115
        %v2128 = vpack.c.b16 %v2118, %v2117
        %v2129 = vpack.c.b16 %v2120, %v2119
        %v2130 = vpack.c.b16 %v2122, %v2121
        %2139 = vmatpush.bf16.msra.mxu0 %v2130
        %2140 = vmatpush.bf16.msra.mxu0 %v2129
        %2141 = vmatpush.bf16.msra.mxu0 %v2128
        %2142 = vmatpush.bf16.msra.mxu0 %v2127
        %2143 = vmatpush.bf16.msra.mxu0 %v2126
        %2144 = vmatpush.bf16.msra.mxu0 %v2125
        %2145 = vmatpush.bf16.msra.mxu0 %v2124
        %2146 = vmatpush.bf16.msra.mxu0 %v2123
        %2147 = vmatmul.bf16.gmra.mxu0 %v2074
        %v2148 = vpop.f32.mrf.mxu0
        %v2149 = vadd.f32 0.0, %v2148
        %v2150 = vpop.f32.mrf.mxu0
        %v2151 = vadd.f32 0.0, %v2150
        %2152 = vdwg.mxu0
        %v2153 = vadd.f32 %v1931, %v2149
        %v2154 = vadd.f32 %v1932, %v2151
        %v2155 = vld [vmem:[%s41] sm:$0x1]
        %v2157 = vperm.slane %v2155, 0
        %v2159 = vadd.f32 %v2153, %v2157
        %v2160 = vadd.f32 %v2154, %v2157
        %v2161 = vld [vmem:[%s43] sm:$0x1]
        %v2162 = vld [vmem:[%s45] sm:$0x1]
        %v2163 = vld [vmem:[#allocation20] sm:$0xf]
        %v2164 = vld [vmem:[#allocation20 + $0x4] sm:$0xf]
        %v2165 = vld [vmem:[#allocation20 + $0x8] sm:$0xf]
        %v2166 = vld [vmem:[#allocation20 + $0xc] sm:$0xf]
        %v2167 = vld [vmem:[#allocation20 + $0x10] sm:$0xf]
        %v2168 = vld [vmem:[#allocation20 + $0x14] sm:$0xf]
        %v2169 = vld [vmem:[#allocation20 + $0x18] sm:$0xf]
        %v2170 = vld [vmem:[#allocation20 + $0x1c] sm:$0xf]
        %v2171 = vld [vmem:[#allocation20 + $0x20] sm:$0xf]
        %v2172 = vld [vmem:[#allocation20 + $0x24] sm:$0xf]
        %v2173 = vld [vmem:[#allocation20 + $0x28] sm:$0xf]
        %v2174 = vld [vmem:[#allocation20 + $0x2c] sm:$0xf]
        %v2175 = vld [vmem:[#allocation20 + $0x30] sm:$0xf]
        %v2176 = vld [vmem:[#allocation20 + $0x34] sm:$0xf]
        %v2177 = vld [vmem:[#allocation20 + $0x38] sm:$0xf]
        %v2178 = vld [vmem:[#allocation20 + $0x3c] sm:$0xf]
        %v2179 = vld [vmem:[%s49] sm:$0x1]
        %v2180 = vld [vmem:[#allocation22] sm:$0xf]
        %v2181 = vld [vmem:[#allocation22 + $0x4] sm:$0xf]
        %v2182 = vld [vmem:[#allocation22 + $0x8] sm:$0xf]
        %v2183 = vld [vmem:[#allocation22 + $0xc] sm:$0xf]
        %v2184 = vld [vmem:[#allocation22 + $0x10] sm:$0xf]
        %v2185 = vld [vmem:[#allocation22 + $0x14] sm:$0xf]
        %v2186 = vld [vmem:[#allocation22 + $0x18] sm:$0xf]
        %v2187 = vld [vmem:[#allocation22 + $0x1c] sm:$0xf]
        %v2188 = vld [vmem:[#allocation22 + $0x20] sm:$0xf]
        %v2189 = vld [vmem:[#allocation22 + $0x24] sm:$0xf]
        %v2190 = vld [vmem:[#allocation22 + $0x28] sm:$0xf]
        %v2191 = vld [vmem:[#allocation22 + $0x2c] sm:$0xf]
        %v2192 = vld [vmem:[#allocation22 + $0x30] sm:$0xf]
        %v2193 = vld [vmem:[#allocation22 + $0x34] sm:$0xf]
        %v2194 = vld [vmem:[#allocation22 + $0x38] sm:$0xf]
        %v2195 = vld [vmem:[#allocation22 + $0x3c] sm:$0xf]
        %v2196 = vld [vmem:[%s53] sm:$0x1]
        %v2197 = vld [vmem:[#allocation23] sm:$0xf]
        %v2198 = vld [vmem:[#allocation23 + $0x4] sm:$0xf]
        %v2199 = vld [vmem:[#allocation23 + $0x8] sm:$0xf]
        %v2200 = vld [vmem:[#allocation23 + $0xc] sm:$0xf]
        %v2201 = vld [vmem:[#allocation23 + $0x10] sm:$0xf]
        %v2202 = vld [vmem:[#allocation23 + $0x14] sm:$0xf]
        %v2203 = vld [vmem:[#allocation23 + $0x18] sm:$0xf]
        %v2204 = vld [vmem:[#allocation23 + $0x1c] sm:$0xf]
        %v2205 = vld [vmem:[#allocation23 + $0x20] sm:$0xf]
        %v2206 = vld [vmem:[#allocation23 + $0x24] sm:$0xf]
        %v2207 = vld [vmem:[#allocation23 + $0x28] sm:$0xf]
        %v2208 = vld [vmem:[#allocation23 + $0x2c] sm:$0xf]
        %v2209 = vld [vmem:[#allocation23 + $0x30] sm:$0xf]
        %v2210 = vld [vmem:[#allocation23 + $0x34] sm:$0xf]
        %v2211 = vld [vmem:[#allocation23 + $0x38] sm:$0xf]
        %v2212 = vld [vmem:[#allocation23 + $0x3c] sm:$0xf]
        %v2213 = vld [vmem:[%s57] sm:$0x1]
        %2214 = vadd.xlane.f32.xlu0 %v2159
        %v2215 = vpop.xlane.xlu0 %2214
        %2216 = vadd.xlane.f32.xlu0 %v2160
        %v2217 = vpop.xlane.xlu0 %2216
        %v2218 = vmul.f32 %v2215, 0.015625
        %v2219 = vmul.f32 %v2217, 0.015625
        %v2220 = vmul.f32 %v2159, %v2159
        %v2221 = vmul.f32 %v2160, %v2160
        %2222 = vadd.xlane.f32.xlu0 %v2220
        %v2223 = vpop.xlane.xlu0 %2222
        %2224 = vadd.xlane.f32.xlu0 %v2221
        %v2225 = vpop.xlane.xlu0 %2224
        %v2226 = vmul.f32 %v2223, 0.015625
        %v2227 = vmul.f32 %v2225, 0.015625
        %v2228 = vmul.f32 %v2218, %v2218
        %v2229 = vmul.f32 %v2219, %v2219
        %v2230 = vsub.f32 %v2226, %v2228
        %v2231 = vsub.f32 %v2227, %v2229
        %v2232 = vsub.f32 %v2159, %v2218
        %v2233 = vsub.f32 %v2160, %v2219
        %v2234 = vadd.f32 %v2230, 1e-05
        %v2235 = vadd.f32 %v2231, 1e-05
        %v2236 = vrsqrt.pop %v2234
        %v2237 = vmul.f32 %v2236, %v2234
        %v2238 = vmul.f32 %v2237, %v2236
        %v2239 = vmul.f32 0.5, %v2238
        %v2240 = vsub.f32 1.5, %v2239
        %v2241 = vmul.f32 %v2236, %v2240
        %vm2242 = vweird.f32 %v2234
        %vm2243 = vweird.f32 %v2236
        %vm2244 = vmor %vm2242, %vm2243
        %v2245 = vsel %vm2244, %v2236, %v2241
        %v2246 = vrsqrt.pop %v2235
        %v2247 = vmul.f32 %v2246, %v2235
        %v2248 = vmul.f32 %v2247, %v2246
        %v2249 = vmul.f32 0.5, %v2248
        %v2250 = vsub.f32 1.5, %v2249
        %v2251 = vmul.f32 %v2246, %v2250
        %vm2252 = vweird.f32 %v2235
        %vm2253 = vweird.f32 %v2246
        %vm2254 = vmor %vm2252, %vm2253
        %v2255 = vsel %vm2254, %v2246, %v2251
        %v2256 = vmul.f32 %v2232, %v2245
        %v2257 = vmul.f32 %v2233, %v2255
        %v2259 = vperm.slane %v2161, 0
        %v2261 = vmul.f32 %v2256, %v2259
        %v2262 = vmul.f32 %v2257, %v2259
        %v2264 = vperm.slane %v2162, 0
        %v2266 = vadd.f32 %v2261, %v2264
        %v2267 = vadd.f32 %v2262, %v2264
        %v2268 = vpack.c.bf16 %v2267, %v2266
        %v2270 = vperm.slane %v2179, 0
        %v2288 = vunpack.c.l.b16 %v2163
        %v2289 = vunpack.c.l.b16 %v2164
        %v2290 = vunpack.c.l.b16 %v2165
        %v2291 = vunpack.c.l.b16 %v2166
        %v2292 = vunpack.c.l.b16 %v2167
        %v2293 = vunpack.c.l.b16 %v2168
        %v2294 = vunpack.c.l.b16 %v2169
        %v2295 = vunpack.c.l.b16 %v2170
        %v2296 = vunpack.c.l.b16 %v2171
        %v2297 = vunpack.c.l.b16 %v2172
        %v2298 = vunpack.c.l.b16 %v2173
        %v2299 = vunpack.c.l.b16 %v2174
        %v2300 = vunpack.c.l.b16 %v2175
        %v2301 = vunpack.c.l.b16 %v2176
        %v2302 = vunpack.c.l.b16 %v2177
        %v2303 = vunpack.c.l.b16 %v2178
        %v2304 = vpack.c.b16 %v2289, %v2288
        %v2305 = vpack.c.b16 %v2291, %v2290
        %v2306 = vpack.c.b16 %v2293, %v2292
        %v2307 = vpack.c.b16 %v2295, %v2294
        %v2308 = vpack.c.b16 %v2297, %v2296
        %v2309 = vpack.c.b16 %v2299, %v2298
        %v2310 = vpack.c.b16 %v2301, %v2300
        %v2311 = vpack.c.b16 %v2303, %v2302
        %2320 = vmatpush.bf16.msra.mxu0 %v2311
        %2321 = vmatpush.bf16.msra.mxu0 %v2310
        %2322 = vmatpush.bf16.msra.mxu0 %v2309
        %2323 = vmatpush.bf16.msra.mxu0 %v2308
        %2324 = vmatpush.bf16.msra.mxu0 %v2307
        %2325 = vmatpush.bf16.msra.mxu0 %v2306
        %2326 = vmatpush.bf16.msra.mxu0 %v2305
        %2327 = vmatpush.bf16.msra.mxu0 %v2304
        %2328 = vmatmul.bf16.gmra.mxu0 %v2268
        %v2329 = vpop.f32.mrf.mxu0
        %v2330 = vadd.f32 %v2270, %v2329
        %v2331 = vpop.f32.mrf.mxu0
        %v2332 = vadd.f32 %v2270, %v2331
        %2333 = vdwg.mxu0
        %v2334 = vpack.c.bf16 %v2332, %v2330
        %v2336 = vperm.slane %v2196, 0
        %v2354 = vunpack.c.l.b16 %v2180
        %v2355 = vunpack.c.l.b16 %v2181
        %v2356 = vunpack.c.l.b16 %v2182
        %v2357 = vunpack.c.l.b16 %v2183
        %v2358 = vunpack.c.l.b16 %v2184
        %v2359 = vunpack.c.l.b16 %v2185
        %v2360 = vunpack.c.l.b16 %v2186
        %v2361 = vunpack.c.l.b16 %v2187
        %v2362 = vunpack.c.l.b16 %v2188
        %v2363 = vunpack.c.l.b16 %v2189
        %v2364 = vunpack.c.l.b16 %v2190
        %v2365 = vunpack.c.l.b16 %v2191
        %v2366 = vunpack.c.l.b16 %v2192
        %v2367 = vunpack.c.l.b16 %v2193
        %v2368 = vunpack.c.l.b16 %v2194
        %v2369 = vunpack.c.l.b16 %v2195
        %v2370 = vpack.c.b16 %v2355, %v2354
        %v2371 = vpack.c.b16 %v2357, %v2356
        %v2372 = vpack.c.b16 %v2359, %v2358
        %v2373 = vpack.c.b16 %v2361, %v2360
        %v2374 = vpack.c.b16 %v2363, %v2362
        %v2375 = vpack.c.b16 %v2365, %v2364
        %v2376 = vpack.c.b16 %v2367, %v2366
        %v2377 = vpack.c.b16 %v2369, %v2368
        %2386 = vmatpush.bf16.msra.mxu0 %v2377
        %2387 = vmatpush.bf16.msra.mxu0 %v2376
        %2388 = vmatpush.bf16.msra.mxu0 %v2375
        %2389 = vmatpush.bf16.msra.mxu0 %v2374
        %2390 = vmatpush.bf16.msra.mxu0 %v2373
        %2391 = vmatpush.bf16.msra.mxu0 %v2372
        %2392 = vmatpush.bf16.msra.mxu0 %v2371
        %2393 = vmatpush.bf16.msra.mxu0 %v2370
        %2394 = vmatmul.bf16.gmra.mxu0 %v2334
        %v2395 = vpop.f32.mrf.mxu0
        %v2396 = vadd.f32 %v2336, %v2395
        %v2397 = vpop.f32.mrf.mxu0
        %v2398 = vadd.f32 %v2336, %v2397
        %2399 = vdwg.mxu0
        %v2400 = vmax.f32 %v2396, 0.0
        %v2401 = vmax.f32 %v2398, 0.0
        %v2402 = vpack.c.bf16 %v2401, %v2400
        %v2404 = vperm.slane %v2213, 0
        %v2422 = vunpack.c.l.b16 %v2197
        %v2423 = vunpack.c.l.b16 %v2198
        %v2424 = vunpack.c.l.b16 %v2199
        %v2425 = vunpack.c.l.b16 %v2200
        %v2426 = vunpack.c.l.b16 %v2201
        %v2427 = vunpack.c.l.b16 %v2202
        %v2428 = vunpack.c.l.b16 %v2203
        %v2429 = vunpack.c.l.b16 %v2204
        %v2430 = vunpack.c.l.b16 %v2205
        %v2431 = vunpack.c.l.b16 %v2206
        %v2432 = vunpack.c.l.b16 %v2207
        %v2433 = vunpack.c.l.b16 %v2208
        %v2434 = vunpack.c.l.b16 %v2209
        %v2435 = vunpack.c.l.b16 %v2210
        %v2436 = vunpack.c.l.b16 %v2211
        %v2437 = vunpack.c.l.b16 %v2212
        %v2438 = vpack.c.b16 %v2423, %v2422
        %v2439 = vpack.c.b16 %v2425, %v2424
        %v2440 = vpack.c.b16 %v2427, %v2426
        %v2441 = vpack.c.b16 %v2429, %v2428
        %v2442 = vpack.c.b16 %v2431, %v2430
        %v2443 = vpack.c.b16 %v2433, %v2432
        %v2444 = vpack.c.b16 %v2435, %v2434
        %v2445 = vpack.c.b16 %v2437, %v2436
        %2454 = vmatpush.bf16.msra.mxu0 %v2445
        %2455 = vmatpush.bf16.msra.mxu0 %v2444
        %2456 = vmatpush.bf16.msra.mxu0 %v2443
        %2457 = vmatpush.bf16.msra.mxu0 %v2442
        %2458 = vmatpush.bf16.msra.mxu0 %v2441
        %2459 = vmatpush.bf16.msra.mxu0 %v2440
        %2460 = vmatpush.bf16.msra.mxu0 %v2439
        %2461 = vmatpush.bf16.msra.mxu0 %v2438
        %2462 = vmatmul.bf16.gmra.mxu0 %v2402
        %v2463 = vpop.f32.mrf.mxu0
        %v2464 = vadd.f32 %v2404, %v2463
        %v2465 = vpop.f32.mrf.mxu0
        %v2466 = vadd.f32 %v2404, %v2465
        %2467 = vdwg.mxu0
        %v2468 = vadd.f32 %v2464, %v2330
        %v2469 = vadd.f32 %v2466, %v2332
        %v2470 = vpack.c.bf16 %v2469, %v2468
        %v2471 = vld [vmem:[#allocation25] sm:$0xf]
        %v2472 = vld [vmem:[#allocation25 + $0x4] sm:$0xf]
        %v2473 = vld [vmem:[#allocation25 + $0x8] sm:$0xf]
        %v2474 = vld [vmem:[#allocation25 + $0xc] sm:$0xf]
        %v2475 = vld [vmem:[#allocation25 + $0x10] sm:$0xf]
        %v2476 = vld [vmem:[#allocation25 + $0x14] sm:$0xf]
        %v2477 = vld [vmem:[#allocation25 + $0x18] sm:$0xf]
        %v2478 = vld [vmem:[#allocation25 + $0x1c] sm:$0xf]
        %v2479 = vld [vmem:[#allocation25 + $0x20] sm:$0xf]
        %v2480 = vld [vmem:[#allocation25 + $0x24] sm:$0xf]
        %v2481 = vld [vmem:[#allocation25 + $0x28] sm:$0xf]
        %v2482 = vld [vmem:[#allocation25 + $0x2c] sm:$0xf]
        %v2483 = vld [vmem:[#allocation25 + $0x30] sm:$0xf]
        %v2484 = vld [vmem:[#allocation25 + $0x34] sm:$0xf]
        %v2485 = vld [vmem:[#allocation25 + $0x38] sm:$0xf]
        %v2486 = vld [vmem:[#allocation25 + $0x3c] sm:$0xf]
        %v2503 = vunpack.c.l.b16 %v2471
        %v2504 = vunpack.c.l.b16 %v2472
        %v2505 = vunpack.c.l.b16 %v2473
        %v2506 = vunpack.c.l.b16 %v2474
        %v2507 = vunpack.c.l.b16 %v2475
        %v2508 = vunpack.c.l.b16 %v2476
        %v2509 = vunpack.c.l.b16 %v2477
        %v2510 = vunpack.c.l.b16 %v2478
        %v2511 = vunpack.c.l.b16 %v2479
        %v2512 = vunpack.c.l.b16 %v2480
        %v2513 = vunpack.c.l.b16 %v2481
        %v2514 = vunpack.c.l.b16 %v2482
        %v2515 = vunpack.c.l.b16 %v2483
        %v2516 = vunpack.c.l.b16 %v2484
        %v2517 = vunpack.c.l.b16 %v2485
        %v2518 = vunpack.c.l.b16 %v2486
        %v2519 = vpack.c.b16 %v2504, %v2503
        %v2520 = vpack.c.b16 %v2506, %v2505
        %v2521 = vpack.c.b16 %v2508, %v2507
        %v2522 = vpack.c.b16 %v2510, %v2509
        %v2523 = vpack.c.b16 %v2512, %v2511
        %v2524 = vpack.c.b16 %v2514, %v2513
        %v2525 = vpack.c.b16 %v2516, %v2515
        %v2526 = vpack.c.b16 %v2518, %v2517
        %2535 = vmatpush.bf16.msra.mxu0 %v2526
        %2536 = vmatpush.bf16.msra.mxu0 %v2525
        %2537 = vmatpush.bf16.msra.mxu0 %v2524
        %2538 = vmatpush.bf16.msra.mxu0 %v2523
        %2539 = vmatpush.bf16.msra.mxu0 %v2522
        %2540 = vmatpush.bf16.msra.mxu0 %v2521
        %2541 = vmatpush.bf16.msra.mxu0 %v2520
        %2542 = vmatpush.bf16.msra.mxu0 %v2519
        %2543 = vmatmul.bf16.gmra.mxu0 %v2470
        %v2544 = vpop.f32.mrf.mxu0
        %v2545 = vadd.f32 0.0, %v2544
        %v2546 = vpop.f32.mrf.mxu0
        %v2547 = vadd.f32 0.0, %v2546
        %2548 = vdwg.mxu0
        %2549 = vst [vmem:[%s1179] sm:$0xff] %v2545
        %2550 = vst [vmem:[%s1179 + $0x8] sm:$0xff] %v2547
        %s2551 = sand.u32 %s728, 1
        %s2552 = scalar_lea.sflag [#allocation4], %s2551
        %s2553 = sand.u32 %s728, 1
        %s2554 = smul.addr %s2553, 16
        %s2555 = scalar_lea.vmem [#allocation26], %s2554
        // Predicated region
        $region201: #{tpu_custom_call.1} parent=139 // pred_check
          %p2556 = pneg %p738
        $region202: #{tpu_custom_call.1} parent=139 // pred_check_branch
          %2558 = sbr.rel (%p2556) target = $region204
        $region203: #{tpu_custom_call.1} parent=139 // pred_region
          %2560 = vsyncadd %s2552, 0
          %s2561 = smul.addr %s85, 2
          %s2562 = smul.addr %s2561, 8
          %s2563 = scalar_lea.hbm %s61, %s2562
          %s2564 = sshll.u32 %s2555, 4
          %s2565 = int_to_ptr.vmem [resolvable:$true] %s2564
          %s2566 = sshll.u32 %s2563, 4
          %s2567 = int_to_ptr.hbm [resolvable:$true] %s2566
          %2572 = dma.vmem_to_hbm [thread:$0]  %s2565, 256, %s2567, %s2552, 128, 128, 8
        $region204: #{tpu_custom_call.1} parent=139 // pred_fallthru
          _
      $region140: #{tpu_custom_call.1} parent=5 // pred_fallthru
        _
      %p2573 = scmp.le.s32.totalorder 2, %s80
      // Predicated region
      $region205: #{tpu_custom_call.1} parent=5 // pred_check
        %p2574 = pneg %p2573
      $region206: #{tpu_custom_call.1} parent=5 // pred_check_branch
        %2576 = sbr.rel (%p2574) target = $region208
      $region207: #{tpu_custom_call.1} parent=5 // pred_region
        %s2577 = ssub.s32 %s80, 2
        // Predicated region
        $region209: #{tpu_custom_call.1} parent=207 // pred_check
          %p2578 = pneg %p744
        $region210: #{tpu_custom_call.1} parent=207 // pred_check_branch
          %2580 = sbr.rel (%p2578) target = $region212
        $region211: #{tpu_custom_call.1} parent=207 // pred_region
          %s2581 = sand.u32 %s729, 1
          %s2582 = scalar_lea.sflag [#allocation4], %s2581
          %s2583 = sand.u32 %s729, 1
          %s2584 = smul.addr %s2583, 16
          %s2585 = scalar_lea.vmem [#allocation26], %s2584
          %2587 = dma.done %s2582, 256
        $region212: #{tpu_custom_call.1} parent=207 // pred_fallthru
          _
      $region208: #{tpu_custom_call.1} parent=5 // pred_fallthru
        _
    $region6: #{tpu_custom_call.1} parent=1 // loop_footer
      %s84 = sadd.s32 1, %s80
    $region7: #{tpu_custom_call.1} parent=1 // loop_footer_branch
      %79 = sbr.rel target = $region3
    $region8: #{tpu_custom_call.1} parent=1 // loop_exit
      _
    %2588 = vsyncpa [#allocation3], 1
    %s2589 = scalar_lea.sflag [#allocation3], 1
    %2590 = vsyncpa %s2589, 1
    %2591 = vsyncpa [#allocation6], 1
    %2592 = vsyncpa [#allocation9], 1
    %2593 = vsyncpa [#allocation12], 1
    %2594 = vsyncpa [#allocation15], 1
    %2595 = vsyncpa [#allocation18], 1
    %2596 = vsyncpa [#allocation21], 1
    %2597 = vsyncpa [#allocation24], 1
    %2598 = vsyncpa [#allocation4], 1
    %s2599 = scalar_lea.sflag [#allocation4], 1
    %2600 = vsyncpa %s2599, 1

</llo_original>
